<compile_context>
chip_gen: v5e
topology: v5e:2x2
jax: 0.10.0
libtpu: 0.0.40
codegen_flags: <defaults>
</compile_context>

<pallas_src>
import jax
import jax.numpy as jnp
from jax.experimental import pallas as pl
from jax.experimental.pallas import tpu as pltpu

LANE = 128          # vreg lane width; one gate slab per 128 lanes
SUBLANE = 8         # f32 sublane granularity
NUM_GATES = 3       # PyTorch GRU gate order: [r, z, n]


def gru_summarizer_kernel(x_ref, w_ih_ref, w_hh_ref, b_fused_ref, b_hn_ref, h_out_ref):
    """GRU over a whole sequence for one batch tile.

    x_ref      : (S, Bt, H)   bf16, time-major batch tile
    w_ih_ref   : (H, 3*128)   bf16, gate-padded input weights   [r | z | n]
    w_hh_ref   : (128, 3*128) bf16, gate+row padded hidden weights (rows H: are 0)
    b_fused_ref: (1, 3*128)   f32,  b_ih + [b_hr | b_hz | 0]
    b_hn_ref   : (1, 128)     f32,  b_hn (kept separate: it is gated by r)
    h_out_ref  : (Bt, 128)    f32,  final hidden state (lanes [H:] stay 0)
    """
    S, Bt, H = x_ref.shape

    # Whole-tile input projection (off the serial path): one MXU matmul, then
    # the fused biases (b_ih plus the r/z parts of b_hh).  Padding columns of
    # w_ih / padding lanes of b_fused are zero, so padded lanes of gi are 0.
    x2d = x_ref[...].reshape(S * Bt, H)            # leading-dim collapse (layout-preserving)
    gi = jnp.dot(x2d, w_ih_ref[...],
                 preferred_element_type=jnp.float32) + b_fused_ref[...]   # (S*Bt, 384) f32

    w_hh = w_hh_ref[...]                                    # (128, 384) bf16, stays bf16 for the MXU
    b_hn = jnp.broadcast_to(b_hn_ref[...], (Bt, LANE))      # hoisted: one broadcast, not S

    h = jnp.zeros((Bt, LANE), dtype=jnp.float32)            # padded lanes remain exactly 0

    # Statically unrolled recurrence (S is small & static).  Every slice below
    # is a whole-(8,128)-tile or 128-lane-aligned view; the recurrent matmul is
    # a single bf16 MXU pass with K=128 (full padded hidden state).
    for t in range(S):
        gi_t = gi[t * Bt:(t + 1) * Bt, :]                                     # (Bt, 384)
        gh = jnp.dot(h.astype(jnp.bfloat16), w_hh,
                     preferred_element_type=jnp.float32)                      # bf16 x bf16 -> f32
        rz = jax.nn.sigmoid(gi_t[:, :2 * LANE] + gh[:, :2 * LANE])            # fused r|z activation
        r = rz[:, :LANE]
        z = rz[:, LANE:]
        n = jnp.tanh(gi_t[:, 2 * LANE:] + r * (gh[:, 2 * LANE:] + b_hn))
        h = (1.0 - z) * n + z * h

    h_out_ref[...] = h                                      # lane-dense (Bt, 128) store


def _pad_gate_cols(w_t, H):
    """(rows, 3H) -> (rows, 3*LANE): each gate's H cols at the start of its 128-lane slab."""
    out = jnp.zeros((w_t.shape[0], NUM_GATES * LANE), jnp.float32)
    for g in range(NUM_GATES):
        out = out.at[:, g * LANE:g * LANE + H].set(w_t[:, g * H:(g + 1) * H])
    return out


def _prepare_params(w_ih, w_hh, b_ih, b_hh, H):
    w_ih = jnp.asarray(w_ih, jnp.float32)        # (3H, H), gates [r, z, n]
    w_hh = jnp.asarray(w_hh, jnp.float32)        # (3H, H)
    b_ih = jnp.asarray(b_ih, jnp.float32)        # (3H,)
    b_hh = jnp.asarray(b_hh, jnp.float32)        # (3H,)

    w_ih_p = _pad_gate_cols(w_ih.T, H).astype(jnp.bfloat16)          # (H, 384)

    # Hidden weights: gate-pad the columns AND zero-pad the rows to 128 so the
    # recurrent matmul consumes the full (Bt, 128) hidden state without slicing.
    w_hh_cols = _pad_gate_cols(w_hh.T, H)                            # (H, 384)
    w_hh_p = jnp.zeros((LANE, NUM_GATES * LANE), jnp.float32)
    w_hh_p = w_hh_p.at[:H, :].set(w_hh_cols).astype(jnp.bfloat16)    # (128, 384)

    # Fold b_hh of the r/z gates into the precomputed input-side bias.
    b_fused = jnp.zeros((1, NUM_GATES * LANE), jnp.float32)
    b_fused = b_fused.at[0, 0 * LANE:0 * LANE + H].set(b_ih[0:H] + b_hh[0:H])
    b_fused = b_fused.at[0, 1 * LANE:1 * LANE + H].set(b_ih[H:2 * H] + b_hh[H:2 * H])
    b_fused = b_fused.at[0, 2 * LANE:2 * LANE + H].set(b_ih[2 * H:3 * H])
    b_hn = jnp.zeros((1, LANE), jnp.float32).at[0, :H].set(b_hh[2 * H:3 * H])
    return w_ih_p, w_hh_p, b_fused, b_hn


def _round_up(n, m):
    return (n + m - 1) // m * m


def rnn_summarizer_forward_batched(x, w_ih, w_hh, b_ih, b_hh, *, batch_tile=None):
    """GRU over a batch of sequences.  x: (B, S, H) -> final hidden state (B, H)."""
    B, S, H = x.shape
    w_ih_p, w_hh_p, b_fused, b_hn = _prepare_params(w_ih, w_hh, b_ih, b_hh, H)

    # Batch tile: multiple of the 8-sublane granularity, capped at 128 MXU rows.
    if batch_tile is None:
        batch_tile = min(_round_up(B, SUBLANE), 128)
    B_pad = _round_up(B, batch_tile)

    # Time-major 3D so one batch chunk is a rectangular BlockSpec tile; padded
    # sequences are all-zero (their hidden states are computed and discarded).
    x_tm = jnp.transpose(jnp.asarray(x, jnp.float32), (1, 0, 2))     # (S, B, H)
    if B_pad != B:
        x_tm = jnp.pad(x_tm, ((0, 0), (0, B_pad - B), (0, 0)))
    x_tm = x_tm.astype(jnp.bfloat16)

    grid = (B_pad // batch_tile,)
    h = pl.pallas_call(
        gru_summarizer_kernel,
        out_shape=jax.ShapeDtypeStruct((B_pad, LANE), jnp.float32),
        grid_spec=pltpu.PrefetchScalarGridSpec(
            num_scalar_prefetch=0,
            grid=grid,
            in_specs=[
                pl.BlockSpec((S, batch_tile, H), lambda c: (0, c, 0)),
                pl.BlockSpec(w_ih_p.shape, lambda c: (0, 0)),
                pl.BlockSpec(w_hh_p.shape, lambda c: (0, 0)),
                pl.BlockSpec(b_fused.shape, lambda c: (0, 0)),
                pl.BlockSpec(b_hn.shape, lambda c: (0, 0)),
            ],
            out_specs=pl.BlockSpec((batch_tile, LANE), lambda c: (c, 0)),
        ),
        compiler_params=pltpu.CompilerParams(
            dimension_semantics=("parallel",)),
    )(x_tm, w_ih_p, w_hh_p, b_fused, b_hn)
    return h[:B, :H]


def rnn_summarizer_forward(representations, w_ih, w_hh, b_ih, b_hh):
    """Equivalent of RNNSummarizer.forward: returns h.squeeze(), shape (H,)."""
    S, H = representations.shape
    h = rnn_summarizer_forward_batched(representations[None], w_ih, w_hh, b_ih, b_hh)
    return h.reshape(H)


def _bf16_roundtrip(a):
    return jnp.asarray(a, jnp.float32).astype(jnp.bfloat16).astype(jnp.float32)


def _gru_reference(x, w_ih, w_hh, b_ih, b_hh, *, bf16_recurrent_matmul=False):
    """Pure-JAX reference (PyTorch GRU semantics, f32 math).

    With bf16_recurrent_matmul=True the hidden state is rounded to bf16 before
    the recurrent matmul, mirroring the kernel's MXU operand precision.
    """
    S, H = x.shape
    h = jnp.zeros((H,), jnp.float32)
    for t in range(S):
        gi = w_ih @ x[t] + b_ih          # (3H,)
        h_mm = _bf16_roundtrip(h) if bf16_recurrent_matmul else h
        gh = w_hh @ h_mm + b_hh          # (3H,)
        r = jax.nn.sigmoid(gi[0:H] + gh[0:H])
        z = jax.nn.sigmoid(gi[H:2 * H] + gh[H:2 * H])
        n = jnp.tanh(gi[2 * H:] + r * gh[2 * H:])
        h = (1.0 - z) * n + z * h
    return h


if __name__ == "__main__":
    S, H, B = 8, 32, 4                 # seq_len=8, input_size=hidden_size=32, 4 sequences
    key = jax.random.PRNGKey(0)
    k_x, k_wih, k_whh, k_bih, k_bhh = jax.random.split(key, 5)

    bound = 1.0 / jnp.sqrt(jnp.float32(H))
    xs = jax.random.normal(k_x, (B, S, H), dtype=jnp.float32)
    w_ih = jax.random.uniform(k_wih, (3 * H, H), minval=-bound, maxval=bound, dtype=jnp.float32)
    w_hh = jax.random.uniform(k_whh, (3 * H, H), minval=-bound, maxval=bound, dtype=jnp.float32)
    b_ih = jax.random.uniform(k_bih, (3 * H,), minval=-bound, maxval=bound, dtype=jnp.float32)
    b_hh = jax.random.uniform(k_bhh, (3 * H,), minval=-bound, maxval=bound, dtype=jnp.float32)

    # Module-equivalent single-sequence call (RNNSummarizer.forward).
    out_single = jax.block_until_ready(rnn_summarizer_forward(xs[0], w_ih, w_hh, b_ih, b_hh))
    assert out_single.shape == (H,)

    # Batched call: many summaries in one launch (amortizes launch/DMA overhead).
    out_batched = jax.block_until_ready(rnn_summarizer_forward_batched(xs, w_ih, w_hh, b_ih, b_hh))
    assert out_batched.shape == (B, H)

    # Numerics-matched reference: same bf16-rounded x / weights / recurrent
    # matmul operand the kernel uses, all accumulation in f32 -> tight check of
    # the kernel's GRU logic.
    w_ih_q, w_hh_q = _bf16_roundtrip(w_ih), _bf16_roundtrip(w_hh)
    for b in range(B):
        got = out_single if b == 0 else out_batched[b]
        ref_q = _gru_reference(_bf16_roundtrip(xs[b]), w_ih_q, w_hh_q, b_ih, b_hh,
                               bf16_recurrent_matmul=True)
        assert jnp.allclose(got, ref_q, rtol=1e-3, atol=1e-3), \
            f"mismatch vs numerics-matched reference (seq {b})"
        # Sanity vs full-f32 PyTorch-semantics reference (loose: bf16 quantization).
        ref_f32 = _gru_reference(jnp.asarray(xs[b], jnp.float32), w_ih, w_hh, b_ih, b_hh)
        assert jnp.allclose(got, ref_f32, rtol=2e-2, atol=2e-2), \
            f"mismatch vs f32 reference (seq {b})"
    assert jnp.allclose(out_single, out_batched[0], rtol=1e-6, atol=1e-6)

    print("KERNEL_OK")
</pallas_src>

<mosaic_0001>
module attributes {stable_mosaic.version = 11 : i64} {
  func.func @gru_summarizer_kernel(%arg0: i32, %arg1: memref<8x8x32xbf16, #tpu.memory_space<vmem>>, %arg2: memref<32x384xbf16, #tpu.memory_space<vmem>>, %arg3: memref<128x384xbf16, #tpu.memory_space<vmem>>, %arg4: memref<1x384xf32, #tpu.memory_space<vmem>>, %arg5: memref<1x128xf32, #tpu.memory_space<vmem>>, %arg6: memref<8x128xf32, #tpu.memory_space<vmem>>) attributes {dimension_semantics = [#tpu.dimension_semantics<parallel>], iteration_bounds = array<i64: 1>, scalar_prefetch = 0 : i64, scratch_operands = 0 : i64, tpu.core_type = #tpu.core_type<tc>, window_params = [{transform_indices = @transform_0, window_bounds = array<i64: 8, 8, 32>}, {pipeline_mode = #tpu.pipeline_mode<synchronous>, transform_indices = @transform_1, window_bounds = array<i64: 32, 384>}, {pipeline_mode = #tpu.pipeline_mode<synchronous>, transform_indices = @transform_2, window_bounds = array<i64: 128, 384>}, {pipeline_mode = #tpu.pipeline_mode<synchronous>, transform_indices = @transform_3, window_bounds = array<i64: 1, 384>}, {pipeline_mode = #tpu.pipeline_mode<synchronous>, transform_indices = @transform_4, window_bounds = array<i64: 1, 128>}, {transform_indices = @transform_5, window_bounds = array<i64: 8, 128>}]} {
    %c0 = arith.constant 0 : index
    %c0_0 = arith.constant 0 : index
    %c0_1 = arith.constant 0 : index
    %0 = vector.load %arg1[%c0, %c0_0, %c0_1] : memref<8x8x32xbf16, #tpu.memory_space<vmem>>, vector<8x8x32xbf16>
    %1 = vector.shape_cast %0 : vector<8x8x32xbf16> to vector<64x32xbf16>
    %c0_2 = arith.constant 0 : index
    %c0_3 = arith.constant 0 : index
    %2 = vector.load %arg2[%c0_2, %c0_3] : memref<32x384xbf16, #tpu.memory_space<vmem>>, vector<32x384xbf16>
    %cst = arith.constant dense<0.000000e+00> : vector<64x384xf32>
    %3 = tpu.matmul %1, %2, %cst {dimension_numbers = #tpu.dot_dimension_numbers<[1], [0], [0], [1], [0, 0, 1, 1], [], []>} : vector<64x32xbf16>, vector<32x384xbf16>, vector<64x384xf32> -> vector<64x384xf32>
    %c0_4 = arith.constant 0 : index
    %c0_5 = arith.constant 0 : index
    %4 = vector.load %arg4[%c0_4, %c0_5] : memref<1x384xf32, #tpu.memory_space<vmem>>, vector<1x384xf32>
    %5 = vector.broadcast %4 : vector<1x384xf32> to vector<64x384xf32>
    %6 = arith.addf %3, %5 : vector<64x384xf32>
    %c0_6 = arith.constant 0 : index
    %c0_7 = arith.constant 0 : index
    %7 = vector.load %arg3[%c0_6, %c0_7] : memref<128x384xbf16, #tpu.memory_space<vmem>>, vector<128x384xbf16>
    %c0_8 = arith.constant 0 : index
    %c0_9 = arith.constant 0 : index
    %8 = vector.load %arg5[%c0_8, %c0_9] : memref<1x128xf32, #tpu.memory_space<vmem>>, vector<1x128xf32>
    %9 = vector.shape_cast %8 : vector<1x128xf32> to vector<1x128xf32>
    %10 = vector.broadcast %9 : vector<1x128xf32> to vector<8x128xf32>
    %cst_10 = arith.constant 0.000000e+00 : f32
    %11 = vector.broadcast %cst_10 : f32 to vector<8x128xf32>
    %12 = vector.extract_strided_slice %6 {offsets = [0, 0], sizes = [8, 384], strides = [1, 1]} : vector<64x384xf32> to vector<8x384xf32>
    %13 = arith.truncf %11 : vector<8x128xf32> to vector<8x128xbf16>
    %cst_11 = arith.constant dense<0.000000e+00> : vector<8x384xf32>
    %14 = tpu.matmul %13, %7, %cst_11 {dimension_numbers = #tpu.dot_dimension_numbers<[1], [0], [0], [1], [0, 0, 1, 1], [], []>} : vector<8x128xbf16>, vector<128x384xbf16>, vector<8x384xf32> -> vector<8x384xf32>
    %15 = vector.extract_strided_slice %12 {offsets = [0, 0], sizes = [8, 256], strides = [1, 1]} : vector<8x384xf32> to vector<8x256xf32>
    %16 = vector.extract_strided_slice %14 {offsets = [0, 0], sizes = [8, 256], strides = [1, 1]} : vector<8x384xf32> to vector<8x256xf32>
    %17 = arith.addf %15, %16 : vector<8x256xf32>
    %18 = arith.negf %17 : vector<8x256xf32>
    %19 = math.exp %18 : vector<8x256xf32>
    %cst_12 = arith.constant 1.000000e+00 : f32
    %20 = vector.broadcast %cst_12 : f32 to vector<8x256xf32>
    %21 = arith.addf %20, %19 : vector<8x256xf32>
    %22 = arith.divf %20, %21 : vector<8x256xf32>
    %23 = vector.extract_strided_slice %22 {offsets = [0, 0], sizes = [8, 128], strides = [1, 1]} : vector<8x256xf32> to vector<8x128xf32>
    %24 = vector.extract_strided_slice %22 {offsets = [0, 128], sizes = [8, 128], strides = [1, 1]} : vector<8x256xf32> to vector<8x128xf32>
    %25 = vector.extract_strided_slice %12 {offsets = [0, 256], sizes = [8, 128], strides = [1, 1]} : vector<8x384xf32> to vector<8x128xf32>
    %26 = vector.extract_strided_slice %14 {offsets = [0, 256], sizes = [8, 128], strides = [1, 1]} : vector<8x384xf32> to vector<8x128xf32>
    %27 = arith.addf %26, %10 : vector<8x128xf32>
    %28 = arith.mulf %23, %27 : vector<8x128xf32>
    %29 = arith.addf %25, %28 : vector<8x128xf32>
    %30 = math.tanh %29 : vector<8x128xf32>
    %cst_13 = arith.constant 1.000000e+00 : f32
    %31 = vector.broadcast %cst_13 : f32 to vector<8x128xf32>
    %32 = arith.subf %31, %24 : vector<8x128xf32>
    %33 = arith.mulf %32, %30 : vector<8x128xf32>
    %34 = arith.mulf %24, %11 : vector<8x128xf32>
    %35 = arith.addf %33, %34 : vector<8x128xf32>
    %36 = vector.extract_strided_slice %6 {offsets = [8, 0], sizes = [8, 384], strides = [1, 1]} : vector<64x384xf32> to vector<8x384xf32>
    %37 = arith.truncf %35 : vector<8x128xf32> to vector<8x128xbf16>
    %cst_14 = arith.constant dense<0.000000e+00> : vector<8x384xf32>
    %38 = tpu.matmul %37, %7, %cst_14 {dimension_numbers = #tpu.dot_dimension_numbers<[1], [0], [0], [1], [0, 0, 1, 1], [], []>} : vector<8x128xbf16>, vector<128x384xbf16>, vector<8x384xf32> -> vector<8x384xf32>
    %39 = vector.extract_strided_slice %36 {offsets = [0, 0], sizes = [8, 256], strides = [1, 1]} : vector<8x384xf32> to vector<8x256xf32>
    %40 = vector.extract_strided_slice %38 {offsets = [0, 0], sizes = [8, 256], strides = [1, 1]} : vector<8x384xf32> to vector<8x256xf32>
    %41 = arith.addf %39, %40 : vector<8x256xf32>
    %42 = arith.negf %41 : vector<8x256xf32>
    %43 = math.exp %42 : vector<8x256xf32>
    %cst_15 = arith.constant 1.000000e+00 : f32
    %44 = vector.broadcast %cst_15 : f32 to vector<8x256xf32>
    %45 = arith.addf %44, %43 : vector<8x256xf32>
    %46 = arith.divf %44, %45 : vector<8x256xf32>
    %47 = vector.extract_strided_slice %46 {offsets = [0, 0], sizes = [8, 128], strides = [1, 1]} : vector<8x256xf32> to vector<8x128xf32>
    %48 = vector.extract_strided_slice %46 {offsets = [0, 128], sizes = [8, 128], strides = [1, 1]} : vector<8x256xf32> to vector<8x128xf32>
    %49 = vector.extract_strided_slice %36 {offsets = [0, 256], sizes = [8, 128], strides = [1, 1]} : vector<8x384xf32> to vector<8x128xf32>
    %50 = vector.extract_strided_slice %38 {offsets = [0, 256], sizes = [8, 128], strides = [1, 1]} : vector<8x384xf32> to vector<8x128xf32>
    %51 = arith.addf %50, %10 : vector<8x128xf32>
    %52 = arith.mulf %47, %51 : vector<8x128xf32>
    %53 = arith.addf %49, %52 : vector<8x128xf32>
    %54 = math.tanh %53 : vector<8x128xf32>
    %cst_16 = arith.constant 1.000000e+00 : f32
    %55 = vector.broadcast %cst_16 : f32 to vector<8x128xf32>
    %56 = arith.subf %55, %48 : vector<8x128xf32>
    %57 = arith.mulf %56, %54 : vector<8x128xf32>
    %58 = arith.mulf %48, %35 : vector<8x128xf32>
    %59 = arith.addf %57, %58 : vector<8x128xf32>
    %60 = vector.extract_strided_slice %6 {offsets = [16, 0], sizes = [8, 384], strides = [1, 1]} : vector<64x384xf32> to vector<8x384xf32>
    %61 = arith.truncf %59 : vector<8x128xf32> to vector<8x128xbf16>
    %cst_17 = arith.constant dense<0.000000e+00> : vector<8x384xf32>
    %62 = tpu.matmul %61, %7, %cst_17 {dimension_numbers = #tpu.dot_dimension_numbers<[1], [0], [0], [1], [0, 0, 1, 1], [], []>} : vector<8x128xbf16>, vector<128x384xbf16>, vector<8x384xf32> -> vector<8x384xf32>
    %63 = vector.extract_strided_slice %60 {offsets = [0, 0], sizes = [8, 256], strides = [1, 1]} : vector<8x384xf32> to vector<8x256xf32>
    %64 = vector.extract_strided_slice %62 {offsets = [0, 0], sizes = [8, 256], strides = [1, 1]} : vector<8x384xf32> to vector<8x256xf32>
    %65 = arith.addf %63, %64 : vector<8x256xf32>
    %66 = arith.negf %65 : vector<8x256xf32>
    %67 = math.exp %66 : vector<8x256xf32>
    %cst_18 = arith.constant 1.000000e+00 : f32
    %68 = vector.broadcast %cst_18 : f32 to vector<8x256xf32>
    %69 = arith.addf %68, %67 : vector<8x256xf32>
    %70 = arith.divf %68, %69 : vector<8x256xf32>
    %71 = vector.extract_strided_slice %70 {offsets = [0, 0], sizes = [8, 128], strides = [1, 1]} : vector<8x256xf32> to vector<8x128xf32>
    %72 = vector.extract_strided_slice %70 {offsets = [0, 128], sizes = [8, 128], strides = [1, 1]} : vector<8x256xf32> to vector<8x128xf32>
    %73 = vector.extract_strided_slice %60 {offsets = [0, 256], sizes = [8, 128], strides = [1, 1]} : vector<8x384xf32> to vector<8x128xf32>
    %74 = vector.extract_strided_slice %62 {offsets = [0, 256], sizes = [8, 128], strides = [1, 1]} : vector<8x384xf32> to vector<8x128xf32>
    %75 = arith.addf %74, %10 : vector<8x128xf32>
    %76 = arith.mulf %71, %75 : vector<8x128xf32>
    %77 = arith.addf %73, %76 : vector<8x128xf32>
    %78 = math.tanh %77 : vector<8x128xf32>
    %cst_19 = arith.constant 1.000000e+00 : f32
    %79 = vector.broadcast %cst_19 : f32 to vector<8x128xf32>
    %80 = arith.subf %79, %72 : vector<8x128xf32>
    %81 = arith.mulf %80, %78 : vector<8x128xf32>
    %82 = arith.mulf %72, %59 : vector<8x128xf32>
    %83 = arith.addf %81, %82 : vector<8x128xf32>
    %84 = vector.extract_strided_slice %6 {offsets = [24, 0], sizes = [8, 384], strides = [1, 1]} : vector<64x384xf32> to vector<8x384xf32>
    %85 = arith.truncf %83 : vector<8x128xf32> to vector<8x128xbf16>
    %cst_20 = arith.constant dense<0.000000e+00> : vector<8x384xf32>
    %86 = tpu.matmul %85, %7, %cst_20 {dimension_numbers = #tpu.dot_dimension_numbers<[1], [0], [0], [1], [0, 0, 1, 1], [], []>} : vector<8x128xbf16>, vector<128x384xbf16>, vector<8x384xf32> -> vector<8x384xf32>
    %87 = vector.extract_strided_slice %84 {offsets = [0, 0], sizes = [8, 256], strides = [1, 1]} : vector<8x384xf32> to vector<8x256xf32>
    %88 = vector.extract_strided_slice %86 {offsets = [0, 0], sizes = [8, 256], strides = [1, 1]} : vector<8x384xf32> to vector<8x256xf32>
    %89 = arith.addf %87, %88 : vector<8x256xf32>
    %90 = arith.negf %89 : vector<8x256xf32>
    %91 = math.exp %90 : vector<8x256xf32>
    %cst_21 = arith.constant 1.000000e+00 : f32
    %92 = vector.broadcast %cst_21 : f32 to vector<8x256xf32>
    %93 = arith.addf %92, %91 : vector<8x256xf32>
    %94 = arith.divf %92, %93 : vector<8x256xf32>
    %95 = vector.extract_strided_slice %94 {offsets = [0, 0], sizes = [8, 128], strides = [1, 1]} : vector<8x256xf32> to vector<8x128xf32>
    %96 = vector.extract_strided_slice %94 {offsets = [0, 128], sizes = [8, 128], strides = [1, 1]} : vector<8x256xf32> to vector<8x128xf32>
    %97 = vector.extract_strided_slice %84 {offsets = [0, 256], sizes = [8, 128], strides = [1, 1]} : vector<8x384xf32> to vector<8x128xf32>
    %98 = vector.extract_strided_slice %86 {offsets = [0, 256], sizes = [8, 128], strides = [1, 1]} : vector<8x384xf32> to vector<8x128xf32>
    %99 = arith.addf %98, %10 : vector<8x128xf32>
    %100 = arith.mulf %95, %99 : vector<8x128xf32>
    %101 = arith.addf %97, %100 : vector<8x128xf32>
    %102 = math.tanh %101 : vector<8x128xf32>
    %cst_22 = arith.constant 1.000000e+00 : f32
    %103 = vector.broadcast %cst_22 : f32 to vector<8x128xf32>
    %104 = arith.subf %103, %96 : vector<8x128xf32>
    %105 = arith.mulf %104, %102 : vector<8x128xf32>
    %106 = arith.mulf %96, %83 : vector<8x128xf32>
    %107 = arith.addf %105, %106 : vector<8x128xf32>
    %108 = vector.extract_strided_slice %6 {offsets = [32, 0], sizes = [8, 384], strides = [1, 1]} : vector<64x384xf32> to vector<8x384xf32>
    %109 = arith.truncf %107 : vector<8x128xf32> to vector<8x128xbf16>
    %cst_23 = arith.constant dense<0.000000e+00> : vector<8x384xf32>
    %110 = tpu.matmul %109, %7, %cst_23 {dimension_numbers = #tpu.dot_dimension_numbers<[1], [0], [0], [1], [0, 0, 1, 1], [], []>} : vector<8x128xbf16>, vector<128x384xbf16>, vector<8x384xf32> -> vector<8x384xf32>
    %111 = vector.extract_strided_slice %108 {offsets = [0, 0], sizes = [8, 256], strides = [1, 1]} : vector<8x384xf32> to vector<8x256xf32>
    %112 = vector.extract_strided_slice %110 {offsets = [0, 0], sizes = [8, 256], strides = [1, 1]} : vector<8x384xf32> to vector<8x256xf32>
    %113 = arith.addf %111, %112 : vector<8x256xf32>
    %114 = arith.negf %113 : vector<8x256xf32>
    %115 = math.exp %114 : vector<8x256xf32>
    %cst_24 = arith.constant 1.000000e+00 : f32
    %116 = vector.broadcast %cst_24 : f32 to vector<8x256xf32>
    %117 = arith.addf %116, %115 : vector<8x256xf32>
    %118 = arith.divf %116, %117 : vector<8x256xf32>
    %119 = vector.extract_strided_slice %118 {offsets = [0, 0], sizes = [8, 128], strides = [1, 1]} : vector<8x256xf32> to vector<8x128xf32>
    %120 = vector.extract_strided_slice %118 {offsets = [0, 128], sizes = [8, 128], strides = [1, 1]} : vector<8x256xf32> to vector<8x128xf32>
    %121 = vector.extract_strided_slice %108 {offsets = [0, 256], sizes = [8, 128], strides = [1, 1]} : vector<8x384xf32> to vector<8x128xf32>
    %122 = vector.extract_strided_slice %110 {offsets = [0, 256], sizes = [8, 128], strides = [1, 1]} : vector<8x384xf32> to vector<8x128xf32>
    %123 = arith.addf %122, %10 : vector<8x128xf32>
    %124 = arith.mulf %119, %123 : vector<8x128xf32>
    %125 = arith.addf %121, %124 : vector<8x128xf32>
    %126 = math.tanh %125 : vector<8x128xf32>
    %cst_25 = arith.constant 1.000000e+00 : f32
    %127 = vector.broadcast %cst_25 : f32 to vector<8x128xf32>
    %128 = arith.subf %127, %120 : vector<8x128xf32>
    %129 = arith.mulf %128, %126 : vector<8x128xf32>
    %130 = arith.mulf %120, %107 : vector<8x128xf32>
    %131 = arith.addf %129, %130 : vector<8x128xf32>
    %132 = vector.extract_strided_slice %6 {offsets = [40, 0], sizes = [8, 384], strides = [1, 1]} : vector<64x384xf32> to vector<8x384xf32>
    %133 = arith.truncf %131 : vector<8x128xf32> to vector<8x128xbf16>
    %cst_26 = arith.constant dense<0.000000e+00> : vector<8x384xf32>
    %134 = tpu.matmul %133, %7, %cst_26 {dimension_numbers = #tpu.dot_dimension_numbers<[1], [0], [0], [1], [0, 0, 1, 1], [], []>} : vector<8x128xbf16>, vector<128x384xbf16>, vector<8x384xf32> -> vector<8x384xf32>
    %135 = vector.extract_strided_slice %132 {offsets = [0, 0], sizes = [8, 256], strides = [1, 1]} : vector<8x384xf32> to vector<8x256xf32>
    %136 = vector.extract_strided_slice %134 {offsets = [0, 0], sizes = [8, 256], strides = [1, 1]} : vector<8x384xf32> to vector<8x256xf32>
    %137 = arith.addf %135, %136 : vector<8x256xf32>
    %138 = arith.negf %137 : vector<8x256xf32>
    %139 = math.exp %138 : vector<8x256xf32>
    %cst_27 = arith.constant 1.000000e+00 : f32
    %140 = vector.broadcast %cst_27 : f32 to vector<8x256xf32>
    %141 = arith.addf %140, %139 : vector<8x256xf32>
    %142 = arith.divf %140, %141 : vector<8x256xf32>
    %143 = vector.extract_strided_slice %142 {offsets = [0, 0], sizes = [8, 128], strides = [1, 1]} : vector<8x256xf32> to vector<8x128xf32>
    %144 = vector.extract_strided_slice %142 {offsets = [0, 128], sizes = [8, 128], strides = [1, 1]} : vector<8x256xf32> to vector<8x128xf32>
    %145 = vector.extract_strided_slice %132 {offsets = [0, 256], sizes = [8, 128], strides = [1, 1]} : vector<8x384xf32> to vector<8x128xf32>
    %146 = vector.extract_strided_slice %134 {offsets = [0, 256], sizes = [8, 128], strides = [1, 1]} : vector<8x384xf32> to vector<8x128xf32>
    %147 = arith.addf %146, %10 : vector<8x128xf32>
    %148 = arith.mulf %143, %147 : vector<8x128xf32>
    %149 = arith.addf %145, %148 : vector<8x128xf32>
    %150 = math.tanh %149 : vector<8x128xf32>
    %cst_28 = arith.constant 1.000000e+00 : f32
    %151 = vector.broadcast %cst_28 : f32 to vector<8x128xf32>
    %152 = arith.subf %151, %144 : vector<8x128xf32>
    %153 = arith.mulf %152, %150 : vector<8x128xf32>
    %154 = arith.mulf %144, %131 : vector<8x128xf32>
    %155 = arith.addf %153, %154 : vector<8x128xf32>
    %156 = vector.extract_strided_slice %6 {offsets = [48, 0], sizes = [8, 384], strides = [1, 1]} : vector<64x384xf32> to vector<8x384xf32>
    %157 = arith.truncf %155 : vector<8x128xf32> to vector<8x128xbf16>
    %cst_29 = arith.constant dense<0.000000e+00> : vector<8x384xf32>
    %158 = tpu.matmul %157, %7, %cst_29 {dimension_numbers = #tpu.dot_dimension_numbers<[1], [0], [0], [1], [0, 0, 1, 1], [], []>} : vector<8x128xbf16>, vector<128x384xbf16>, vector<8x384xf32> -> vector<8x384xf32>
    %159 = vector.extract_strided_slice %156 {offsets = [0, 0], sizes = [8, 256], strides = [1, 1]} : vector<8x384xf32> to vector<8x256xf32>
    %160 = vector.extract_strided_slice %158 {offsets = [0, 0], sizes = [8, 256], strides = [1, 1]} : vector<8x384xf32> to vector<8x256xf32>
    %161 = arith.addf %159, %160 : vector<8x256xf32>
    %162 = arith.negf %161 : vector<8x256xf32>
    %163 = math.exp %162 : vector<8x256xf32>
    %cst_30 = arith.constant 1.000000e+00 : f32
    %164 = vector.broadcast %cst_30 : f32 to vector<8x256xf32>
    %165 = arith.addf %164, %163 : vector<8x256xf32>
    %166 = arith.divf %164, %165 : vector<8x256xf32>
    %167 = vector.extract_strided_slice %166 {offsets = [0, 0], sizes = [8, 128], strides = [1, 1]} : vector<8x256xf32> to vector<8x128xf32>
    %168 = vector.extract_strided_slice %166 {offsets = [0, 128], sizes = [8, 128], strides = [1, 1]} : vector<8x256xf32> to vector<8x128xf32>
    %169 = vector.extract_strided_slice %156 {offsets = [0, 256], sizes = [8, 128], strides = [1, 1]} : vector<8x384xf32> to vector<8x128xf32>
    %170 = vector.extract_strided_slice %158 {offsets = [0, 256], sizes = [8, 128], strides = [1, 1]} : vector<8x384xf32> to vector<8x128xf32>
    %171 = arith.addf %170, %10 : vector<8x128xf32>
    %172 = arith.mulf %167, %171 : vector<8x128xf32>
    %173 = arith.addf %169, %172 : vector<8x128xf32>
    %174 = math.tanh %173 : vector<8x128xf32>
    %cst_31 = arith.constant 1.000000e+00 : f32
    %175 = vector.broadcast %cst_31 : f32 to vector<8x128xf32>
    %176 = arith.subf %175, %168 : vector<8x128xf32>
    %177 = arith.mulf %176, %174 : vector<8x128xf32>
    %178 = arith.mulf %168, %155 : vector<8x128xf32>
    %179 = arith.addf %177, %178 : vector<8x128xf32>
    %180 = vector.extract_strided_slice %6 {offsets = [56, 0], sizes = [8, 384], strides = [1, 1]} : vector<64x384xf32> to vector<8x384xf32>
    %181 = arith.truncf %179 : vector<8x128xf32> to vector<8x128xbf16>
    %cst_32 = arith.constant dense<0.000000e+00> : vector<8x384xf32>
    %182 = tpu.matmul %181, %7, %cst_32 {dimension_numbers = #tpu.dot_dimension_numbers<[1], [0], [0], [1], [0, 0, 1, 1], [], []>} : vector<8x128xbf16>, vector<128x384xbf16>, vector<8x384xf32> -> vector<8x384xf32>
    %183 = vector.extract_strided_slice %180 {offsets = [0, 0], sizes = [8, 256], strides = [1, 1]} : vector<8x384xf32> to vector<8x256xf32>
    %184 = vector.extract_strided_slice %182 {offsets = [0, 0], sizes = [8, 256], strides = [1, 1]} : vector<8x384xf32> to vector<8x256xf32>
    %185 = arith.addf %183, %184 : vector<8x256xf32>
    %186 = arith.negf %185 : vector<8x256xf32>
    %187 = math.exp %186 : vector<8x256xf32>
    %cst_33 = arith.constant 1.000000e+00 : f32
    %188 = vector.broadcast %cst_33 : f32 to vector<8x256xf32>
    %189 = arith.addf %188, %187 : vector<8x256xf32>
    %190 = arith.divf %188, %189 : vector<8x256xf32>
    %191 = vector.extract_strided_slice %190 {offsets = [0, 0], sizes = [8, 128], strides = [1, 1]} : vector<8x256xf32> to vector<8x128xf32>
    %192 = vector.extract_strided_slice %190 {offsets = [0, 128], sizes = [8, 128], strides = [1, 1]} : vector<8x256xf32> to vector<8x128xf32>
    %193 = vector.extract_strided_slice %180 {offsets = [0, 256], sizes = [8, 128], strides = [1, 1]} : vector<8x384xf32> to vector<8x128xf32>
    %194 = vector.extract_strided_slice %182 {offsets = [0, 256], sizes = [8, 128], strides = [1, 1]} : vector<8x384xf32> to vector<8x128xf32>
    %195 = arith.addf %194, %10 : vector<8x128xf32>
    %196 = arith.mulf %191, %195 : vector<8x128xf32>
    %197 = arith.addf %193, %196 : vector<8x128xf32>
    %198 = math.tanh %197 : vector<8x128xf32>
    %cst_34 = arith.constant 1.000000e+00 : f32
    %199 = vector.broadcast %cst_34 : f32 to vector<8x128xf32>
    %200 = arith.subf %199, %192 : vector<8x128xf32>
    %201 = arith.mulf %200, %198 : vector<8x128xf32>
    %202 = arith.mulf %192, %179 : vector<8x128xf32>
    %203 = arith.addf %201, %202 : vector<8x128xf32>
    %c0_35 = arith.constant 0 : index
    %c0_36 = arith.constant 0 : index
    %204 = vector.load %arg6[%c0_35, %c0_36] : memref<8x128xf32, #tpu.memory_space<vmem>>, vector<8x128xf32>
    tpu.vector_store %arg6[%c0_35, %c0_36], %203 {strides = array<i32>} : memref<8x128xf32, #tpu.memory_space<vmem>>, vector<8x128xf32>,
    return
  }
  func.func @transform_0(%arg0: i32) -> (i32, i32, i32) {
    %c0_i32 = arith.constant 0 : i32
    %c0_i32_0 = arith.constant 0 : i32
    %c0_i32_1 = arith.constant 0 : i32
    return %c0_i32, %arg0, %c0_i32_0 : i32, i32, i32
  }
  func.func @transform_1(%arg0: i32) -> (i32, i32) {
    %c0_i32 = arith.constant 0 : i32
    %c0_i32_0 = arith.constant 0 : i32
    %c0_i32_1 = arith.constant 0 : i32
    return %c0_i32, %c0_i32_0 : i32, i32
  }
  func.func @transform_2(%arg0: i32) -> (i32, i32) {
    %c0_i32 = arith.constant 0 : i32
    %c0_i32_0 = arith.constant 0 : i32
    %c0_i32_1 = arith.constant 0 : i32
    return %c0_i32, %c0_i32_0 : i32, i32
  }
  func.func @transform_3(%arg0: i32) -> (i32, i32) {
    %c0_i32 = arith.constant 0 : i32
    %c0_i32_0 = arith.constant 0 : i32
    %c0_i32_1 = arith.constant 0 : i32
    return %c0_i32, %c0_i32_0 : i32, i32
  }
  func.func @transform_4(%arg0: i32) -> (i32, i32) {
    %c0_i32 = arith.constant 0 : i32
    %c0_i32_0 = arith.constant 0 : i32
    %c0_i32_1 = arith.constant 0 : i32
    return %c0_i32, %c0_i32_0 : i32, i32
  }
  func.func @transform_5(%arg0: i32) -> (i32, i32) {
    %c0_i32 = arith.constant 0 : i32
    %c0_i32_0 = arith.constant 0 : i32
    return %arg0, %c0_i32 : i32, i32
  }
}

</mosaic_0001>

<llo_original>
// kernel: tpu_custom_call.1
$region0: #{tpu_custom_call.1}
  #allocation0 [shape = 'u32[]', space=smem, size = 0x4, offset = 0x4, fixed_abs, tag = 'smem constant byte address 0x4 - core index']
  #allocation1 [shape = 'u32[72,128]{1,0:T(1,128)}', space=vmem, size = 0x9000, scoped, tag = 'internal scratch']
  %s0 = inlined_call_operand.hbm [shape: bf16[8,8,32], index: 0, kind: input, shape index: {}]
  %s1 = inlined_call_operand.hbm [shape: bf16[32,384], index: 1, kind: input, shape index: {}]
  %s2 = inlined_call_operand.hbm [shape: bf16[128,384], index: 2, kind: input, shape index: {}]
  %s3 = inlined_call_operand.hbm [shape: f32[1,384], index: 3, kind: input, shape index: {}]
  %s4 = inlined_call_operand.vmem [shape: f32[1,128], index: 4, kind: input, shape index: {}]
  %s5 = inlined_call_operand.hbm [shape: f32[8,128], index: 5, kind: output, shape index: {}]
  %s6 = sld [smem:[#allocation0]]
  $region46: #{tpu_custom_call.1} parent=0
    _
  %s8 = ssub.s32 1, %s6
  %s9 = scalar_select 0, %s8, %s6
  $region1: #{tpu_custom_call.1} parent=0
    #allocation2 [shape = 'u8[16384]{0}', space=vmem, size = 0x4000, scoped, tag = 'input window, operand 0, single buffered']
    #allocation3 [shape = 's32[1]{0}', space=sflag, size = 0x4, scoped, tag = 'scoped memory for tpu_custom_call.1']
    #allocation4 [shape = 's32[1]{0}', space=sflag, size = 0x4, scoped, tag = 'scoped memory for tpu_custom_call.1']
    #allocation5 [shape = 'u8[24576]{0}', space=vmem, size = 0x6000, scoped, tag = 'input window, operand 1, single buffered']
    #allocation6 [shape = 's32[1]{0}', space=sflag, size = 0x4, scoped, tag = 'scoped memory for tpu_custom_call.1']
    #allocation7 [shape = 'u8[98304]{0}', space=vmem, size = 0x18000, scoped, tag = 'input window, operand 2, single buffered']
    #allocation8 [shape = 'u8[1536]{0}', space=vmem, size = 0x800, scoped, tag = 'input window, operand 3, single buffered']
    #allocation9 [shape = 's32[1]{0}', space=sflag, size = 0x4, scoped, tag = 'scoped memory for tpu_custom_call.1']
    #allocation10 [shape = 'u8[4096]{0}', space=vmem, size = 0x1000, scoped, tag = 'output window, operand 0, single buffered']
    %10 = vsyncpa [#allocation3], 0
    %11 = vsyncpa [#allocation6], 0
    %12 = vsyncpa [#allocation9], 0
    %13 = vsyncpa [#allocation4], 0
    // Predicated region
    $region2: #{tpu_custom_call.1} parent=1 // pred_check
      _
    $region3: #{tpu_custom_call.1} parent=1 // pred_check_branch
      %15 = sbr.rel (0) target = $region5
    $region4: #{tpu_custom_call.1} parent=1 // pred_region
      %17 = vsyncadd [#allocation3], 0
      %s18 = sshll.u32 %s0, 4
      %s19 = int_to_ptr.hbm [resolvable:$true] %s18
      %s20 = sshll.u32 [#allocation2], 4
      %s21 = int_to_ptr.vmem [resolvable:$true] %s20
      %26 = dma.hbm_to_vmem [thread:$0]  %s19, 512, %s21, [#allocation3], 64, 64, 4
    $region5: #{tpu_custom_call.1} parent=1 // pred_fallthru
      _
    // Predicated region
    $region6: #{tpu_custom_call.1} parent=1 // pred_check
      _
    $region7: #{tpu_custom_call.1} parent=1 // pred_check_branch
      %28 = sbr.rel (0) target = $region9
    $region8: #{tpu_custom_call.1} parent=1 // pred_region
      %30 = vsyncadd [#allocation6], 0
      %s31 = sshll.u32 %s1, 4
      %s32 = int_to_ptr.hbm [resolvable:$true] %s31
      %s33 = sshll.u32 [#allocation5], 4
      %s34 = int_to_ptr.vmem [resolvable:$true] %s33
      %39 = dma.hbm_to_vmem [thread:$0]  %s32, 768, %s34, [#allocation6], 192, 192, 12
    $region9: #{tpu_custom_call.1} parent=1 // pred_fallthru
      _
    // Predicated region
    $region10: #{tpu_custom_call.1} parent=1 // pred_check
      _
    $region11: #{tpu_custom_call.1} parent=1 // pred_check_branch
      %41 = sbr.rel (0) target = $region13
    $region12: #{tpu_custom_call.1} parent=1 // pred_region
      %43 = vsyncadd [#allocation6], 0
      %s44 = sshll.u32 %s2, 4
      %s45 = int_to_ptr.hbm [resolvable:$true] %s44
      %s46 = sshll.u32 [#allocation7], 4
      %s47 = int_to_ptr.vmem [resolvable:$true] %s46
      %52 = dma.hbm_to_vmem [thread:$0]  %s45, 3072, %s47, [#allocation6], 192, 192, 12
    $region13: #{tpu_custom_call.1} parent=1 // pred_fallthru
      _
    // Predicated region
    $region14: #{tpu_custom_call.1} parent=1 // pred_check
      _
    $region15: #{tpu_custom_call.1} parent=1 // pred_check_branch
      %54 = sbr.rel (0) target = $region17
    $region16: #{tpu_custom_call.1} parent=1 // pred_region
      %56 = vsyncadd [#allocation9], 0
      %s58 = sshll.u32 %s3, 4
      %s59 = int_to_ptr.hbm [resolvable:$true] %s58
      %s60 = sshll.u32 [#allocation8], 4
      %s61 = int_to_ptr.vmem [resolvable:$true] %s60
      %63 = dma.hbm_to_vmem [thread:$0]  %s59, 48, %s61, [#allocation9]
    $region17: #{tpu_custom_call.1} parent=1 // pred_fallthru
      _
    // Predicated region
    $region18: #{tpu_custom_call.1} parent=1 // pred_check
      _
    $region19: #{tpu_custom_call.1} parent=1 // pred_check_branch
      %65 = sbr.rel (0) target = $region21
    $region20: #{tpu_custom_call.1} parent=1 // pred_region
      _
    $region21: #{tpu_custom_call.1} parent=1 // pred_fallthru
      _
    // Predicated region
    $region22: #{tpu_custom_call.1} parent=1 // pred_check
      _
    $region23: #{tpu_custom_call.1} parent=1 // pred_check_branch
      %67 = sbr.rel (0) target = $region25
    $region24: #{tpu_custom_call.1} parent=1 // pred_region
      %69 = dma.done [#allocation3], 512
    $region25: #{tpu_custom_call.1} parent=1 // pred_fallthru
      _
    // Predicated region
    $region26: #{tpu_custom_call.1} parent=1 // pred_check
      _
    $region27: #{tpu_custom_call.1} parent=1 // pred_check_branch
      %71 = sbr.rel (0) target = $region29
    $region28: #{tpu_custom_call.1} parent=1 // pred_region
      %73 = dma.done [#allocation6], 768
    $region29: #{tpu_custom_call.1} parent=1 // pred_fallthru
      _
    // Predicated region
    $region30: #{tpu_custom_call.1} parent=1 // pred_check
      _
    $region31: #{tpu_custom_call.1} parent=1 // pred_check_branch
      %75 = sbr.rel (0) target = $region33
    $region32: #{tpu_custom_call.1} parent=1 // pred_region
      %77 = dma.done [#allocation6], 3072
    $region33: #{tpu_custom_call.1} parent=1 // pred_fallthru
      _
    // Predicated region
    $region34: #{tpu_custom_call.1} parent=1 // pred_check
      _
    $region35: #{tpu_custom_call.1} parent=1 // pred_check_branch
      %79 = sbr.rel (0) target = $region37
    $region36: #{tpu_custom_call.1} parent=1 // pred_region
      %81 = dma.done [#allocation9], 48
    $region37: #{tpu_custom_call.1} parent=1 // pred_fallthru
      _
    %v83 = vld [vmem:[#allocation2] sm:$0xf]
    %v84 = vld [vmem:[#allocation2 + $0x4] sm:$0xf]
    %v85 = vld [vmem:[#allocation2 + $0x8] sm:$0xf]
    %v86 = vld [vmem:[#allocation2 + $0xc] sm:$0xf]
    %v87 = vld [vmem:[#allocation2 + $0x10] sm:$0xf]
    %v88 = vld [vmem:[#allocation2 + $0x14] sm:$0xf]
    %v89 = vld [vmem:[#allocation2 + $0x18] sm:$0xf]
    %v90 = vld [vmem:[#allocation2 + $0x1c] sm:$0xf]
    %v91 = vld [vmem:[#allocation5] sm:$0xff]
    %v92 = vld [vmem:[#allocation5 + $0x8] sm:$0xf]
    %v93 = vld [vmem:[#allocation5 + $0xc] sm:$0xff]
    %v94 = vld [vmem:[#allocation5 + $0x14] sm:$0xf]
    %v95 = vld [vmem:[#allocation5 + $0x18] sm:$0xff]
    %v96 = vld [vmem:[#allocation5 + $0x20] sm:$0xf]
    %v97 = vld [vmem:[#allocation5 + $0x24] sm:$0xff]
    %v98 = vld [vmem:[#allocation5 + $0x2c] sm:$0xf]
    %v99 = vld [vmem:[#allocation8] sm:$0x7]
    %v101 = vperm.slane %v99, 0
    %v102 = vperm.slane %v99, 1
    %v103 = vperm.slane %v99, 2
    %v115 = vunpack.c.l.b16 %v83
    %v116 = vunpack.c.l.b16 %v84
    %v117 = vunpack.c.l.b16 %v85
    %v118 = vunpack.c.l.b16 %v86
    %v119 = vunpack.c.l.b16 %v87
    %v120 = vunpack.c.l.b16 %v88
    %v121 = vunpack.c.l.b16 %v89
    %v122 = vunpack.c.l.b16 %v90
    %v123 = vpack.c.b16 %v116, %v115
    %v124 = vpack.c.b16 %v118, %v117
    %v125 = vpack.c.b16 %v120, %v119
    %v126 = vpack.c.b16 %v122, %v121
    %v135 = vunpack.c.l.b16 %v91
    %v136 = vunpack.c.h.b16 %v91
    %v137 = vunpack.c.l.b16 %v92
    %v138 = vunpack.c.l.b16 %v93
    %v139 = vunpack.c.h.b16 %v93
    %v140 = vunpack.c.l.b16 %v94
    %v141 = vunpack.c.l.b16 %v95
    %v142 = vunpack.c.h.b16 %v95
    %v143 = vunpack.c.l.b16 %v96
    %v144 = vunpack.c.l.b16 %v97
    %v145 = vunpack.c.h.b16 %v97
    %v146 = vunpack.c.l.b16 %v98
    %v147 = vpack.c.b16 %v138, %v135
    %v148 = vpack.c.b16 %v139, %v136
    %v149 = vpack.c.b16 %v140, %v137
    %v150 = vpack.c.b16 %v144, %v141
    %v151 = vpack.c.b16 %v145, %v142
    %v152 = vpack.c.b16 %v146, %v143
    %vm159 = vcmask 261120
    %v161 = vsel %vm159, %v123, 0
    %v164 = vsel %vm159, %v124, 0
    %v167 = vsel %vm159, %v125, 0
    %v170 = vsel %vm159, %v126, 0
    %172 = vmatpush.bf16.msra.mxu0 0
    %173 = vmatpush.bf16.msra.mxu0 0
    %174 = vmatpush.bf16.msra.mxu0 0
    %175 = vmatpush.bf16.msra.mxu0 0
    %176 = vmatpush.bf16.msra.mxu0 0
    %177 = vmatpush.bf16.msra.mxu0 0
    %178 = vmatpush.bf16.msra.mxu0 %v150
    %179 = vmatpush.bf16.msra.mxu0 %v147
    %180 = vmatmul.bf16.gmra.mxu0 %v161
    %v181 = vpop.f32.mrf.mxu0
    %v182 = vadd.f32 %v101, %v181
    %v183 = vpop.f32.mrf.mxu0
    %v184 = vadd.f32 %v101, %v183
    %185 = vmatmul.bf16.gmra.mxu0 %v164
    %v186 = vpop.f32.mrf.mxu0
    %v187 = vadd.f32 %v101, %v186
    %v188 = vpop.f32.mrf.mxu0
    %v189 = vadd.f32 %v101, %v188
    %190 = vmatmul.bf16.gmra.mxu0 %v167
    %v191 = vpop.f32.mrf.mxu0
    %v192 = vadd.f32 %v101, %v191
    %v193 = vpop.f32.mrf.mxu0
    %v194 = vadd.f32 %v101, %v193
    %195 = vmatmul.bf16.gmra.mxu0 %v170
    %v196 = vpop.f32.mrf.mxu0
    %v197 = vadd.f32 %v101, %v196
    %v198 = vpop.f32.mrf.mxu0
    %v199 = vadd.f32 %v101, %v198
    %200 = vdwg.mxu0
    %201 = vmatpush.bf16.msra.mxu0 0
    %202 = vmatpush.bf16.msra.mxu0 0
    %203 = vmatpush.bf16.msra.mxu0 0
    %204 = vmatpush.bf16.msra.mxu0 0
    %205 = vmatpush.bf16.msra.mxu0 0
    %206 = vmatpush.bf16.msra.mxu0 0
    %207 = vmatpush.bf16.msra.mxu0 %v151
    %208 = vmatpush.bf16.msra.mxu0 %v148
    %209 = vmatmul.bf16.gmra.mxu0 %v161
    %v210 = vpop.f32.mrf.mxu0
    %v211 = vadd.f32 %v102, %v210
    %v212 = vpop.f32.mrf.mxu0
    %v213 = vadd.f32 %v102, %v212
    %214 = vmatmul.bf16.gmra.mxu0 %v164
    %v215 = vpop.f32.mrf.mxu0
    %v216 = vadd.f32 %v102, %v215
    %v217 = vpop.f32.mrf.mxu0
    %v218 = vadd.f32 %v102, %v217
    %219 = vmatmul.bf16.gmra.mxu0 %v167
    %v220 = vpop.f32.mrf.mxu0
    %v221 = vadd.f32 %v102, %v220
    %v222 = vpop.f32.mrf.mxu0
    %v223 = vadd.f32 %v102, %v222
    %224 = vmatmul.bf16.gmra.mxu0 %v170
    %v225 = vpop.f32.mrf.mxu0
    %v226 = vadd.f32 %v102, %v225
    %v227 = vpop.f32.mrf.mxu0
    %v228 = vadd.f32 %v102, %v227
    %229 = vdwg.mxu0
    %230 = vmatpush.bf16.msra.mxu0 0
    %231 = vmatpush.bf16.msra.mxu0 0
    %232 = vmatpush.bf16.msra.mxu0 0
    %233 = vmatpush.bf16.msra.mxu0 0
    %234 = vmatpush.bf16.msra.mxu0 0
    %235 = vmatpush.bf16.msra.mxu0 0
    %236 = vmatpush.bf16.msra.mxu0 %v152
    %237 = vmatpush.bf16.msra.mxu0 %v149
    %238 = vmatmul.bf16.gmra.mxu0 %v161
    %v239 = vpop.f32.mrf.mxu0
    %v240 = vadd.f32 %v103, %v239
    %v241 = vpop.f32.mrf.mxu0
    %v242 = vadd.f32 %v103, %v241
    %243 = vmatmul.bf16.gmra.mxu0 %v164
    %v244 = vpop.f32.mrf.mxu0
    %v245 = vadd.f32 %v103, %v244
    %v246 = vpop.f32.mrf.mxu0
    %v247 = vadd.f32 %v103, %v246
    %248 = vmatmul.bf16.gmra.mxu0 %v167
    %v249 = vpop.f32.mrf.mxu0
    %v250 = vadd.f32 %v103, %v249
    %v251 = vpop.f32.mrf.mxu0
    %v252 = vadd.f32 %v103, %v251
    %253 = vmatmul.bf16.gmra.mxu0 %v170
    %v254 = vpop.f32.mrf.mxu0
    %v255 = vadd.f32 %v103, %v254
    %v256 = vpop.f32.mrf.mxu0
    %v257 = vadd.f32 %v103, %v256
    %258 = vdwg.mxu0
    %v259 = vld [vmem:[#allocation7] sm:$0xff]
    %v260 = vld [vmem:[#allocation7 + $0x8] sm:$0xf]
    %v261 = vld [vmem:[#allocation7 + $0xc] sm:$0xff]
    %v262 = vld [vmem:[#allocation7 + $0x14] sm:$0xf]
    %v263 = vld [vmem:[#allocation7 + $0x18] sm:$0xff]
    %v264 = vld [vmem:[#allocation7 + $0x20] sm:$0xf]
    %v265 = vld [vmem:[#allocation7 + $0x24] sm:$0xff]
    %v266 = vld [vmem:[#allocation7 + $0x2c] sm:$0xf]
    %v267 = vld [vmem:[#allocation7 + $0x30] sm:$0xff]
    %v268 = vld [vmem:[#allocation7 + $0x38] sm:$0xf]
    %v269 = vld [vmem:[#allocation7 + $0x3c] sm:$0xff]
    %v270 = vld [vmem:[#allocation7 + $0x44] sm:$0xf]
    %v271 = vld [vmem:[#allocation7 + $0x48] sm:$0xff]
    %v272 = vld [vmem:[#allocation7 + $0x50] sm:$0xf]
    %v273 = vld [vmem:[#allocation7 + $0x54] sm:$0xff]
    %v274 = vld [vmem:[#allocation7 + $0x5c] sm:$0xf]
    %v275 = vld [vmem:[#allocation7 + $0x60] sm:$0xff]
    %v276 = vld [vmem:[#allocation7 + $0x68] sm:$0xf]
    %v277 = vld [vmem:[#allocation7 + $0x6c] sm:$0xff]
    %v278 = vld [vmem:[#allocation7 + $0x74] sm:$0xf]
    %v279 = vld [vmem:[#allocation7 + $0x78] sm:$0xff]
    %v280 = vld [vmem:[#allocation7 + $0x80] sm:$0xf]
    %v281 = vld [vmem:[#allocation7 + $0x84] sm:$0xff]
    %v282 = vld [vmem:[#allocation7 + $0x8c] sm:$0xf]
    %v283 = vld [vmem:[#allocation7 + $0x90] sm:$0xff]
    %v284 = vld [vmem:[#allocation7 + $0x98] sm:$0xf]
    %v285 = vld [vmem:[#allocation7 + $0x9c] sm:$0xff]
    %v286 = vld [vmem:[#allocation7 + $0xa4] sm:$0xf]
    %v287 = vld [vmem:[#allocation7 + $0xa8] sm:$0xff]
    %v288 = vld [vmem:[#allocation7 + $0xb0] sm:$0xf]
    %v289 = vld [vmem:[#allocation7 + $0xb4] sm:$0xff]
    %v290 = vld [vmem:[#allocation7 + $0xbc] sm:$0xf]
    %v291 = vld [vmem:[%s4] sm:$0x1]
    %v293 = vperm.slane %v291, 0
    %v327 = vunpack.c.l.b16 %v259
    %v328 = vunpack.c.h.b16 %v259
    %v329 = vunpack.c.l.b16 %v260
    %v330 = vunpack.c.l.b16 %v261
    %v331 = vunpack.c.h.b16 %v261
    %v332 = vunpack.c.l.b16 %v262
    %v333 = vunpack.c.l.b16 %v263
    %v334 = vunpack.c.h.b16 %v263
    %v335 = vunpack.c.l.b16 %v264
    %v336 = vunpack.c.l.b16 %v265
    %v337 = vunpack.c.h.b16 %v265
    %v338 = vunpack.c.l.b16 %v266
    %v339 = vunpack.c.l.b16 %v267
    %v340 = vunpack.c.h.b16 %v267
    %v341 = vunpack.c.l.b16 %v268
    %v342 = vunpack.c.l.b16 %v269
    %v343 = vunpack.c.h.b16 %v269
    %v344 = vunpack.c.l.b16 %v270
    %v345 = vunpack.c.l.b16 %v271
    %v346 = vunpack.c.h.b16 %v271
    %v347 = vunpack.c.l.b16 %v272
    %v348 = vunpack.c.l.b16 %v273
    %v349 = vunpack.c.h.b16 %v273
    %v350 = vunpack.c.l.b16 %v274
    %v351 = vunpack.c.l.b16 %v275
    %v352 = vunpack.c.h.b16 %v275
    %v353 = vunpack.c.l.b16 %v276
    %v354 = vunpack.c.l.b16 %v277
    %v355 = vunpack.c.h.b16 %v277
    %v356 = vunpack.c.l.b16 %v278
    %v357 = vunpack.c.l.b16 %v279
    %v358 = vunpack.c.h.b16 %v279
    %v359 = vunpack.c.l.b16 %v280
    %v360 = vunpack.c.l.b16 %v281
    %v361 = vunpack.c.h.b16 %v281
    %v362 = vunpack.c.l.b16 %v282
    %v363 = vunpack.c.l.b16 %v283
    %v364 = vunpack.c.h.b16 %v283
    %v365 = vunpack.c.l.b16 %v284
    %v366 = vunpack.c.l.b16 %v285
    %v367 = vunpack.c.h.b16 %v285
    %v368 = vunpack.c.l.b16 %v286
    %v369 = vunpack.c.l.b16 %v287
    %v370 = vunpack.c.h.b16 %v287
    %v371 = vunpack.c.l.b16 %v288
    %v372 = vunpack.c.l.b16 %v289
    %v373 = vunpack.c.h.b16 %v289
    %v374 = vunpack.c.l.b16 %v290
    %v375 = vpack.c.b16 %v330, %v327
    %v376 = vpack.c.b16 %v331, %v328
    %v377 = vpack.c.b16 %v332, %v329
    %v378 = vpack.c.b16 %v336, %v333
    %v379 = vpack.c.b16 %v337, %v334
    %v380 = vpack.c.b16 %v338, %v335
    %v381 = vpack.c.b16 %v342, %v339
    %v382 = vpack.c.b16 %v343, %v340
    %v383 = vpack.c.b16 %v344, %v341
    %v384 = vpack.c.b16 %v348, %v345
    %v385 = vpack.c.b16 %v349, %v346
    %v386 = vpack.c.b16 %v350, %v347
    %v387 = vpack.c.b16 %v354, %v351
    %v388 = vpack.c.b16 %v355, %v352
    %v389 = vpack.c.b16 %v356, %v353
    %v390 = vpack.c.b16 %v360, %v357
    %v391 = vpack.c.b16 %v361, %v358
    %v392 = vpack.c.b16 %v362, %v359
    %v393 = vpack.c.b16 %v366, %v363
    %v394 = vpack.c.b16 %v367, %v364
    %v395 = vpack.c.b16 %v368, %v365
    %v396 = vpack.c.b16 %v372, %v369
    %v397 = vpack.c.b16 %v373, %v370
    %v398 = vpack.c.b16 %v374, %v371
    %423 = vmatpush.bf16.msra.mxu0 %v396
    %424 = vmatpush.bf16.msra.mxu0 %v393
    %425 = vmatpush.bf16.msra.mxu0 %v390
    %426 = vmatpush.bf16.msra.mxu0 %v387
    %427 = vmatpush.bf16.msra.mxu0 %v384
    %428 = vmatpush.bf16.msra.mxu0 %v381
    %429 = vmatpush.bf16.msra.mxu0 %v378
    %430 = vmatpush.bf16.msra.mxu0 %v375
    %431 = vmatmul.bf16.gmra.mxu0 0
    %v432 = vpop.f32.mrf.mxu0
    %v433 = vadd.f32 0.0, %v432
    %v434 = vpop.f32.mrf.mxu0
    %435 = vdwg.mxu0
    %436 = vmatpush.bf16.msra.mxu0 %v397
    %437 = vmatpush.bf16.msra.mxu0 %v394
    %438 = vmatpush.bf16.msra.mxu0 %v391
    %439 = vmatpush.bf16.msra.mxu0 %v388
    %440 = vmatpush.bf16.msra.mxu0 %v385
    %441 = vmatpush.bf16.msra.mxu0 %v382
    %442 = vmatpush.bf16.msra.mxu0 %v379
    %443 = vmatpush.bf16.msra.mxu0 %v376
    %444 = vmatmul.bf16.gmra.mxu0 0
    %v445 = vpop.f32.mrf.mxu0
    %v446 = vadd.f32 0.0, %v445
    %v447 = vpop.f32.mrf.mxu0
    %448 = vdwg.mxu0
    %449 = vmatpush.bf16.msra.mxu0 %v398
    %450 = vmatpush.bf16.msra.mxu0 %v395
    %451 = vmatpush.bf16.msra.mxu0 %v392
    %452 = vmatpush.bf16.msra.mxu0 %v389
    %453 = vmatpush.bf16.msra.mxu0 %v386
    %454 = vmatpush.bf16.msra.mxu0 %v383
    %455 = vmatpush.bf16.msra.mxu0 %v380
    %456 = vmatpush.bf16.msra.mxu0 %v377
    %457 = vmatmul.bf16.gmra.mxu0 0
    %v458 = vpop.f32.mrf.mxu0
    %v459 = vadd.f32 0.0, %v458
    %v460 = vpop.f32.mrf.mxu0
    %461 = vdwg.mxu0
    %v462 = vadd.f32 %v182, %v433
    %v463 = vadd.f32 %v211, %v446
    %v464 = vxor.u32 %v462, 2147483648
    %v465 = vxor.u32 %v463, 2147483648
    %v466 = vmul.f32 %v464, 1.442695
    %v467 = vpow.pop %v466
    %v468 = vmul.f32 %v465, 1.442695
    %v469 = vpow.pop %v468
    %v470 = vadd.f32 %v467, 1.0
    %v471 = vadd.f32 %v469, 1.0
    %v472 = vrcp.pop %v470
    %v473 = vmul.f32 %v470, %v472
    %v474 = vsub.f32 1.0, %v473
    %v475 = vmul.f32 %v472, %v474
    %v476 = vadd.f32 %v472, %v475
    %vm477 = vweird.f32 %v470
    %vm478 = vweird.f32 %v472
    %vm479 = vmor %vm477, %vm478
    %v480 = vsel %vm479, %v472, %v476
    %v481 = vand.u32 2147483647, %v470
    %vm482 = vcmp.eq.f32.partialorder %v481, 8.507059e+37
    %v483 = vand.u32 %v470, 2147483648
    %v484 = vor.u32 1.1754944e-38, %v483
    %v485 = vsel %vm482, %v484, %v480
    %v486 = vmul.f32 1.0, %v485
    %v487 = vrcp.pop %v471
    %v488 = vmul.f32 %v471, %v487
    %v489 = vsub.f32 1.0, %v488
    %v490 = vmul.f32 %v487, %v489
    %v491 = vadd.f32 %v487, %v490
    %vm492 = vweird.f32 %v471
    %vm493 = vweird.f32 %v487
    %vm494 = vmor %vm492, %vm493
    %v495 = vsel %vm494, %v487, %v491
    %v496 = vand.u32 2147483647, %v471
    %vm497 = vcmp.eq.f32.partialorder %v496, 8.507059e+37
    %v498 = vand.u32 %v471, 2147483648
    %v499 = vor.u32 1.1754944e-38, %v498
    %v500 = vsel %vm497, %v499, %v495
    %v501 = vmul.f32 1.0, %v500
    %v502 = vadd.f32 %v459, %v293
    %v503 = vmul.f32 %v486, %v502
    %v504 = vadd.f32 %v240, %v503
    %v505 = vtanh.pop %v504
    %v506 = vsub.f32 1.0, %v501
    %v507 = vmul.f32 %v506, %v505
    %v508 = vmul.f32 %v501, 0.0
    %v509 = vadd.f32 %v507, %v508
    %v510 = vpack.c.bf16 %v509, %v509
    %511 = vmatpush.bf16.msra.mxu0 %v396
    %512 = vmatpush.bf16.msra.mxu0 %v393
    %513 = vmatpush.bf16.msra.mxu0 %v390
    %514 = vmatpush.bf16.msra.mxu0 %v387
    %515 = vmatpush.bf16.msra.mxu0 %v384
    %516 = vmatpush.bf16.msra.mxu0 %v381
    %517 = vmatpush.bf16.msra.mxu0 %v378
    %518 = vmatpush.bf16.msra.mxu0 %v375
    %519 = vmatmul.bf16.gmra.mxu0 %v510
    %v520 = vpop.f32.mrf.mxu0
    %v521 = vadd.f32 0.0, %v520
    %v522 = vpop.f32.mrf.mxu0
    %523 = vdwg.mxu0
    %524 = vmatpush.bf16.msra.mxu0 %v397
    %525 = vmatpush.bf16.msra.mxu0 %v394
    %526 = vmatpush.bf16.msra.mxu0 %v391
    %527 = vmatpush.bf16.msra.mxu0 %v388
    %528 = vmatpush.bf16.msra.mxu0 %v385
    %529 = vmatpush.bf16.msra.mxu0 %v382
    %530 = vmatpush.bf16.msra.mxu0 %v379
    %531 = vmatpush.bf16.msra.mxu0 %v376
    %532 = vmatmul.bf16.gmra.mxu0 %v510
    %v533 = vpop.f32.mrf.mxu0
    %v534 = vadd.f32 0.0, %v533
    %v535 = vpop.f32.mrf.mxu0
    %536 = vdwg.mxu0
    %537 = vmatpush.bf16.msra.mxu0 %v398
    %538 = vmatpush.bf16.msra.mxu0 %v395
    %539 = vmatpush.bf16.msra.mxu0 %v392
    %540 = vmatpush.bf16.msra.mxu0 %v389
    %541 = vmatpush.bf16.msra.mxu0 %v386
    %542 = vmatpush.bf16.msra.mxu0 %v383
    %543 = vmatpush.bf16.msra.mxu0 %v380
    %544 = vmatpush.bf16.msra.mxu0 %v377
    %545 = vmatmul.bf16.gmra.mxu0 %v510
    %v546 = vpop.f32.mrf.mxu0
    %v547 = vadd.f32 0.0, %v546
    %v548 = vpop.f32.mrf.mxu0
    %549 = vdwg.mxu0
    %v550 = vadd.f32 %v184, %v521
    %v551 = vadd.f32 %v213, %v534
    %v552 = vxor.u32 %v550, 2147483648
    %v553 = vxor.u32 %v551, 2147483648
    %v554 = vmul.f32 %v552, 1.442695
    %v555 = vpow.pop %v554
    %v556 = vmul.f32 %v553, 1.442695
    %v557 = vpow.pop %v556
    %v558 = vadd.f32 %v555, 1.0
    %v559 = vadd.f32 %v557, 1.0
    %v560 = vrcp.pop %v558
    %v561 = vmul.f32 %v558, %v560
    %v562 = vsub.f32 1.0, %v561
    %v563 = vmul.f32 %v560, %v562
    %v564 = vadd.f32 %v560, %v563
    %vm565 = vweird.f32 %v558
    %vm566 = vweird.f32 %v560
    %vm567 = vmor %vm565, %vm566
    %v568 = vsel %vm567, %v560, %v564
    %v569 = vand.u32 2147483647, %v558
    %vm570 = vcmp.eq.f32.partialorder %v569, 8.507059e+37
    %v571 = vand.u32 %v558, 2147483648
    %v572 = vor.u32 1.1754944e-38, %v571
    %v573 = vsel %vm570, %v572, %v568
    %v574 = vmul.f32 1.0, %v573
    %v575 = vrcp.pop %v559
    %v576 = vmul.f32 %v559, %v575
    %v577 = vsub.f32 1.0, %v576
    %v578 = vmul.f32 %v575, %v577
    %v579 = vadd.f32 %v575, %v578
    %vm580 = vweird.f32 %v559
    %vm581 = vweird.f32 %v575
    %vm582 = vmor %vm580, %vm581
    %v583 = vsel %vm582, %v575, %v579
    %v584 = vand.u32 2147483647, %v559
    %vm585 = vcmp.eq.f32.partialorder %v584, 8.507059e+37
    %v586 = vand.u32 %v559, 2147483648
    %v587 = vor.u32 1.1754944e-38, %v586
    %v588 = vsel %vm585, %v587, %v583
    %v589 = vmul.f32 1.0, %v588
    %v590 = vadd.f32 %v547, %v293
    %v591 = vmul.f32 %v574, %v590
    %v592 = vadd.f32 %v242, %v591
    %v593 = vtanh.pop %v592
    %v594 = vsub.f32 1.0, %v589
    %v595 = vmul.f32 %v594, %v593
    %v596 = vmul.f32 %v589, %v509
    %v597 = vadd.f32 %v595, %v596
    %v598 = vpack.c.bf16 %v597, %v597
    %599 = vmatpush.bf16.msra.mxu0 %v396
    %600 = vmatpush.bf16.msra.mxu0 %v393
    %601 = vmatpush.bf16.msra.mxu0 %v390
    %602 = vmatpush.bf16.msra.mxu0 %v387
    %603 = vmatpush.bf16.msra.mxu0 %v384
    %604 = vmatpush.bf16.msra.mxu0 %v381
    %605 = vmatpush.bf16.msra.mxu0 %v378
    %606 = vmatpush.bf16.msra.mxu0 %v375
    %607 = vmatmul.bf16.gmra.mxu0 %v598
    %v608 = vpop.f32.mrf.mxu0
    %v609 = vadd.f32 0.0, %v608
    %v610 = vpop.f32.mrf.mxu0
    %611 = vdwg.mxu0
    %612 = vmatpush.bf16.msra.mxu0 %v397
    %613 = vmatpush.bf16.msra.mxu0 %v394
    %614 = vmatpush.bf16.msra.mxu0 %v391
    %615 = vmatpush.bf16.msra.mxu0 %v388
    %616 = vmatpush.bf16.msra.mxu0 %v385
    %617 = vmatpush.bf16.msra.mxu0 %v382
    %618 = vmatpush.bf16.msra.mxu0 %v379
    %619 = vmatpush.bf16.msra.mxu0 %v376
    %620 = vmatmul.bf16.gmra.mxu0 %v598
    %v621 = vpop.f32.mrf.mxu0
    %v622 = vadd.f32 0.0, %v621
    %v623 = vpop.f32.mrf.mxu0
    %624 = vdwg.mxu0
    %625 = vmatpush.bf16.msra.mxu0 %v398
    %626 = vmatpush.bf16.msra.mxu0 %v395
    %627 = vmatpush.bf16.msra.mxu0 %v392
    %628 = vmatpush.bf16.msra.mxu0 %v389
    %629 = vmatpush.bf16.msra.mxu0 %v386
    %630 = vmatpush.bf16.msra.mxu0 %v383
    %631 = vmatpush.bf16.msra.mxu0 %v380
    %632 = vmatpush.bf16.msra.mxu0 %v377
    %633 = vmatmul.bf16.gmra.mxu0 %v598
    %v634 = vpop.f32.mrf.mxu0
    %v635 = vadd.f32 0.0, %v634
    %v636 = vpop.f32.mrf.mxu0
    %637 = vdwg.mxu0
    %v638 = vadd.f32 %v187, %v609
    %v639 = vadd.f32 %v216, %v622
    %v640 = vxor.u32 %v638, 2147483648
    %v641 = vxor.u32 %v639, 2147483648
    %v642 = vmul.f32 %v640, 1.442695
    %v643 = vpow.pop %v642
    %v644 = vmul.f32 %v641, 1.442695
    %v645 = vpow.pop %v644
    %v646 = vadd.f32 %v643, 1.0
    %v647 = vadd.f32 %v645, 1.0
    %v648 = vrcp.pop %v646
    %v649 = vmul.f32 %v646, %v648
    %v650 = vsub.f32 1.0, %v649
    %v651 = vmul.f32 %v648, %v650
    %v652 = vadd.f32 %v648, %v651
    %vm653 = vweird.f32 %v646
    %vm654 = vweird.f32 %v648
    %vm655 = vmor %vm653, %vm654
    %v656 = vsel %vm655, %v648, %v652
    %v657 = vand.u32 2147483647, %v646
    %vm658 = vcmp.eq.f32.partialorder %v657, 8.507059e+37
    %v659 = vand.u32 %v646, 2147483648
    %v660 = vor.u32 1.1754944e-38, %v659
    %v661 = vsel %vm658, %v660, %v656
    %v662 = vmul.f32 1.0, %v661
    %v663 = vrcp.pop %v647
    %v664 = vmul.f32 %v647, %v663
    %v665 = vsub.f32 1.0, %v664
    %v666 = vmul.f32 %v663, %v665
    %v667 = vadd.f32 %v663, %v666
    %vm668 = vweird.f32 %v647
    %vm669 = vweird.f32 %v663
    %vm670 = vmor %vm668, %vm669
    %v671 = vsel %vm670, %v663, %v667
    %v672 = vand.u32 2147483647, %v647
    %vm673 = vcmp.eq.f32.partialorder %v672, 8.507059e+37
    %v674 = vand.u32 %v647, 2147483648
    %v675 = vor.u32 1.1754944e-38, %v674
    %v676 = vsel %vm673, %v675, %v671
    %v677 = vmul.f32 1.0, %v676
    %v678 = vadd.f32 %v635, %v293
    %v679 = vmul.f32 %v662, %v678
    %v680 = vadd.f32 %v245, %v679
    %v681 = vtanh.pop %v680
    %v682 = vsub.f32 1.0, %v677
    %v683 = vmul.f32 %v682, %v681
    %v684 = vmul.f32 %v677, %v597
    %v685 = vadd.f32 %v683, %v684
    %v686 = vpack.c.bf16 %v685, %v685
    %687 = vmatpush.bf16.msra.mxu0 %v396
    %688 = vmatpush.bf16.msra.mxu0 %v393
    %689 = vmatpush.bf16.msra.mxu0 %v390
    %690 = vmatpush.bf16.msra.mxu0 %v387
    %691 = vmatpush.bf16.msra.mxu0 %v384
    %692 = vmatpush.bf16.msra.mxu0 %v381
    %693 = vmatpush.bf16.msra.mxu0 %v378
    %694 = vmatpush.bf16.msra.mxu0 %v375
    %695 = vmatmul.bf16.gmra.mxu0 %v686
    %v696 = vpop.f32.mrf.mxu0
    %v697 = vadd.f32 0.0, %v696
    %v698 = vpop.f32.mrf.mxu0
    %699 = vdwg.mxu0
    %700 = vmatpush.bf16.msra.mxu0 %v397
    %701 = vmatpush.bf16.msra.mxu0 %v394
    %702 = vmatpush.bf16.msra.mxu0 %v391
    %703 = vmatpush.bf16.msra.mxu0 %v388
    %704 = vmatpush.bf16.msra.mxu0 %v385
    %705 = vmatpush.bf16.msra.mxu0 %v382
    %706 = vmatpush.bf16.msra.mxu0 %v379
    %707 = vmatpush.bf16.msra.mxu0 %v376
    %708 = vmatmul.bf16.gmra.mxu0 %v686
    %v709 = vpop.f32.mrf.mxu0
    %v710 = vadd.f32 0.0, %v709
    %v711 = vpop.f32.mrf.mxu0
    %712 = vdwg.mxu0
    %713 = vmatpush.bf16.msra.mxu0 %v398
    %714 = vmatpush.bf16.msra.mxu0 %v395
    %715 = vmatpush.bf16.msra.mxu0 %v392
    %716 = vmatpush.bf16.msra.mxu0 %v389
    %717 = vmatpush.bf16.msra.mxu0 %v386
    %718 = vmatpush.bf16.msra.mxu0 %v383
    %719 = vmatpush.bf16.msra.mxu0 %v380
    %720 = vmatpush.bf16.msra.mxu0 %v377
    %721 = vmatmul.bf16.gmra.mxu0 %v686
    %v722 = vpop.f32.mrf.mxu0
    %v723 = vadd.f32 0.0, %v722
    %v724 = vpop.f32.mrf.mxu0
    %725 = vdwg.mxu0
    %v726 = vadd.f32 %v189, %v697
    %v727 = vadd.f32 %v218, %v710
    %v728 = vxor.u32 %v726, 2147483648
    %v729 = vxor.u32 %v727, 2147483648
    %v730 = vmul.f32 %v728, 1.442695
    %v731 = vpow.pop %v730
    %v732 = vmul.f32 %v729, 1.442695
    %v733 = vpow.pop %v732
    %v734 = vadd.f32 %v731, 1.0
    %v735 = vadd.f32 %v733, 1.0
    %v736 = vrcp.pop %v734
    %v737 = vmul.f32 %v734, %v736
    %v738 = vsub.f32 1.0, %v737
    %v739 = vmul.f32 %v736, %v738
    %v740 = vadd.f32 %v736, %v739
    %vm741 = vweird.f32 %v734
    %vm742 = vweird.f32 %v736
    %vm743 = vmor %vm741, %vm742
    %v744 = vsel %vm743, %v736, %v740
    %v745 = vand.u32 2147483647, %v734
    %vm746 = vcmp.eq.f32.partialorder %v745, 8.507059e+37
    %v747 = vand.u32 %v734, 2147483648
    %v748 = vor.u32 1.1754944e-38, %v747
    %v749 = vsel %vm746, %v748, %v744
    %v750 = vmul.f32 1.0, %v749
    %v751 = vrcp.pop %v735
    %v752 = vmul.f32 %v735, %v751
    %v753 = vsub.f32 1.0, %v752
    %v754 = vmul.f32 %v751, %v753
    %v755 = vadd.f32 %v751, %v754
    %vm756 = vweird.f32 %v735
    %vm757 = vweird.f32 %v751
    %vm758 = vmor %vm756, %vm757
    %v759 = vsel %vm758, %v751, %v755
    %v760 = vand.u32 2147483647, %v735
    %vm761 = vcmp.eq.f32.partialorder %v760, 8.507059e+37
    %v762 = vand.u32 %v735, 2147483648
    %v763 = vor.u32 1.1754944e-38, %v762
    %v764 = vsel %vm761, %v763, %v759
    %v765 = vmul.f32 1.0, %v764
    %v766 = vadd.f32 %v723, %v293
    %v767 = vmul.f32 %v750, %v766
    %v768 = vadd.f32 %v247, %v767
    %v769 = vtanh.pop %v768
    %v770 = vsub.f32 1.0, %v765
    %v771 = vmul.f32 %v770, %v769
    %v772 = vmul.f32 %v765, %v685
    %v773 = vadd.f32 %v771, %v772
    %v774 = vpack.c.bf16 %v773, %v773
    %775 = vmatpush.bf16.msra.mxu0 %v396
    %776 = vmatpush.bf16.msra.mxu0 %v393
    %777 = vmatpush.bf16.msra.mxu0 %v390
    %778 = vmatpush.bf16.msra.mxu0 %v387
    %779 = vmatpush.bf16.msra.mxu0 %v384
    %780 = vmatpush.bf16.msra.mxu0 %v381
    %781 = vmatpush.bf16.msra.mxu0 %v378
    %782 = vmatpush.bf16.msra.mxu0 %v375
    %783 = vmatmul.bf16.gmra.mxu0 %v774
    %v784 = vpop.f32.mrf.mxu0
    %v785 = vadd.f32 0.0, %v784
    %v786 = vpop.f32.mrf.mxu0
    %787 = vdwg.mxu0
    %788 = vmatpush.bf16.msra.mxu0 %v397
    %789 = vmatpush.bf16.msra.mxu0 %v394
    %790 = vmatpush.bf16.msra.mxu0 %v391
    %791 = vmatpush.bf16.msra.mxu0 %v388
    %792 = vmatpush.bf16.msra.mxu0 %v385
    %793 = vmatpush.bf16.msra.mxu0 %v382
    %794 = vmatpush.bf16.msra.mxu0 %v379
    %795 = vmatpush.bf16.msra.mxu0 %v376
    %796 = vmatmul.bf16.gmra.mxu0 %v774
    %v797 = vpop.f32.mrf.mxu0
    %v798 = vadd.f32 0.0, %v797
    %v799 = vpop.f32.mrf.mxu0
    %800 = vdwg.mxu0
    %801 = vmatpush.bf16.msra.mxu0 %v398
    %802 = vmatpush.bf16.msra.mxu0 %v395
    %803 = vmatpush.bf16.msra.mxu0 %v392
    %804 = vmatpush.bf16.msra.mxu0 %v389
    %805 = vmatpush.bf16.msra.mxu0 %v386
    %806 = vmatpush.bf16.msra.mxu0 %v383
    %807 = vmatpush.bf16.msra.mxu0 %v380
    %808 = vmatpush.bf16.msra.mxu0 %v377
    %809 = vmatmul.bf16.gmra.mxu0 %v774
    %v810 = vpop.f32.mrf.mxu0
    %v811 = vadd.f32 0.0, %v810
    %v812 = vpop.f32.mrf.mxu0
    %813 = vdwg.mxu0
    %v814 = vadd.f32 %v192, %v785
    %v815 = vadd.f32 %v221, %v798
    %v816 = vxor.u32 %v814, 2147483648
    %v817 = vxor.u32 %v815, 2147483648
    %v818 = vmul.f32 %v816, 1.442695
    %v819 = vpow.pop %v818
    %v820 = vmul.f32 %v817, 1.442695
    %v821 = vpow.pop %v820
    %v822 = vadd.f32 %v819, 1.0
    %v823 = vadd.f32 %v821, 1.0
    %v824 = vrcp.pop %v822
    %v825 = vmul.f32 %v822, %v824
    %v826 = vsub.f32 1.0, %v825
    %v827 = vmul.f32 %v824, %v826
    %v828 = vadd.f32 %v824, %v827
    %vm829 = vweird.f32 %v822
    %vm830 = vweird.f32 %v824
    %vm831 = vmor %vm829, %vm830
    %v832 = vsel %vm831, %v824, %v828
    %v833 = vand.u32 2147483647, %v822
    %vm834 = vcmp.eq.f32.partialorder %v833, 8.507059e+37
    %v835 = vand.u32 %v822, 2147483648
    %v836 = vor.u32 1.1754944e-38, %v835
    %v837 = vsel %vm834, %v836, %v832
    %v838 = vmul.f32 1.0, %v837
    %v839 = vrcp.pop %v823
    %v840 = vmul.f32 %v823, %v839
    %v841 = vsub.f32 1.0, %v840
    %v842 = vmul.f32 %v839, %v841
    %v843 = vadd.f32 %v839, %v842
    %vm844 = vweird.f32 %v823
    %vm845 = vweird.f32 %v839
    %vm846 = vmor %vm844, %vm845
    %v847 = vsel %vm846, %v839, %v843
    %v848 = vand.u32 2147483647, %v823
    %vm849 = vcmp.eq.f32.partialorder %v848, 8.507059e+37
    %v850 = vand.u32 %v823, 2147483648
    %v851 = vor.u32 1.1754944e-38, %v850
    %v852 = vsel %vm849, %v851, %v847
    %v853 = vmul.f32 1.0, %v852
    %v854 = vadd.f32 %v811, %v293
    %v855 = vmul.f32 %v838, %v854
    %v856 = vadd.f32 %v250, %v855
    %v857 = vtanh.pop %v856
    %v858 = vsub.f32 1.0, %v853
    %v859 = vmul.f32 %v858, %v857
    %v860 = vmul.f32 %v853, %v773
    %v861 = vadd.f32 %v859, %v860
    %v862 = vpack.c.bf16 %v861, %v861
    %863 = vmatpush.bf16.msra.mxu0 %v396
    %864 = vmatpush.bf16.msra.mxu0 %v393
    %865 = vmatpush.bf16.msra.mxu0 %v390
    %866 = vmatpush.bf16.msra.mxu0 %v387
    %867 = vmatpush.bf16.msra.mxu0 %v384
    %868 = vmatpush.bf16.msra.mxu0 %v381
    %869 = vmatpush.bf16.msra.mxu0 %v378
    %870 = vmatpush.bf16.msra.mxu0 %v375
    %871 = vmatmul.bf16.gmra.mxu0 %v862
    %v872 = vpop.f32.mrf.mxu0
    %v873 = vadd.f32 0.0, %v872
    %v874 = vpop.f32.mrf.mxu0
    %875 = vdwg.mxu0
    %876 = vmatpush.bf16.msra.mxu0 %v397
    %877 = vmatpush.bf16.msra.mxu0 %v394
    %878 = vmatpush.bf16.msra.mxu0 %v391
    %879 = vmatpush.bf16.msra.mxu0 %v388
    %880 = vmatpush.bf16.msra.mxu0 %v385
    %881 = vmatpush.bf16.msra.mxu0 %v382
    %882 = vmatpush.bf16.msra.mxu0 %v379
    %883 = vmatpush.bf16.msra.mxu0 %v376
    %884 = vmatmul.bf16.gmra.mxu0 %v862
    %v885 = vpop.f32.mrf.mxu0
    %v886 = vadd.f32 0.0, %v885
    %v887 = vpop.f32.mrf.mxu0
    %888 = vdwg.mxu0
    %889 = vmatpush.bf16.msra.mxu0 %v398
    %890 = vmatpush.bf16.msra.mxu0 %v395
    %891 = vmatpush.bf16.msra.mxu0 %v392
    %892 = vmatpush.bf16.msra.mxu0 %v389
    %893 = vmatpush.bf16.msra.mxu0 %v386
    %894 = vmatpush.bf16.msra.mxu0 %v383
    %895 = vmatpush.bf16.msra.mxu0 %v380
    %896 = vmatpush.bf16.msra.mxu0 %v377
    %897 = vmatmul.bf16.gmra.mxu0 %v862
    %v898 = vpop.f32.mrf.mxu0
    %v899 = vadd.f32 0.0, %v898
    %v900 = vpop.f32.mrf.mxu0
    %901 = vdwg.mxu0
    %v902 = vadd.f32 %v194, %v873
    %v903 = vadd.f32 %v223, %v886
    %v904 = vxor.u32 %v902, 2147483648
    %v905 = vxor.u32 %v903, 2147483648
    %v906 = vmul.f32 %v904, 1.442695
    %v907 = vpow.pop %v906
    %v908 = vmul.f32 %v905, 1.442695
    %v909 = vpow.pop %v908
    %v910 = vadd.f32 %v907, 1.0
    %v911 = vadd.f32 %v909, 1.0
    %v912 = vrcp.pop %v910
    %v913 = vmul.f32 %v910, %v912
    %v914 = vsub.f32 1.0, %v913
    %v915 = vmul.f32 %v912, %v914
    %v916 = vadd.f32 %v912, %v915
    %vm917 = vweird.f32 %v910
    %vm918 = vweird.f32 %v912
    %vm919 = vmor %vm917, %vm918
    %v920 = vsel %vm919, %v912, %v916
    %v921 = vand.u32 2147483647, %v910
    %vm922 = vcmp.eq.f32.partialorder %v921, 8.507059e+37
    %v923 = vand.u32 %v910, 2147483648
    %v924 = vor.u32 1.1754944e-38, %v923
    %v925 = vsel %vm922, %v924, %v920
    %v926 = vmul.f32 1.0, %v925
    %v927 = vrcp.pop %v911
    %v928 = vmul.f32 %v911, %v927
    %v929 = vsub.f32 1.0, %v928
    %v930 = vmul.f32 %v927, %v929
    %v931 = vadd.f32 %v927, %v930
    %vm932 = vweird.f32 %v911
    %vm933 = vweird.f32 %v927
    %vm934 = vmor %vm932, %vm933
    %v935 = vsel %vm934, %v927, %v931
    %v936 = vand.u32 2147483647, %v911
    %vm937 = vcmp.eq.f32.partialorder %v936, 8.507059e+37
    %v938 = vand.u32 %v911, 2147483648
    %v939 = vor.u32 1.1754944e-38, %v938
    %v940 = vsel %vm937, %v939, %v935
    %v941 = vmul.f32 1.0, %v940
    %v942 = vadd.f32 %v899, %v293
    %v943 = vmul.f32 %v926, %v942
    %v944 = vadd.f32 %v252, %v943
    %v945 = vtanh.pop %v944
    %v946 = vsub.f32 1.0, %v941
    %v947 = vmul.f32 %v946, %v945
    %v948 = vmul.f32 %v941, %v861
    %v949 = vadd.f32 %v947, %v948
    %v950 = vpack.c.bf16 %v949, %v949
    %951 = vmatpush.bf16.msra.mxu0 %v396
    %952 = vmatpush.bf16.msra.mxu0 %v393
    %953 = vmatpush.bf16.msra.mxu0 %v390
    %954 = vmatpush.bf16.msra.mxu0 %v387
    %955 = vmatpush.bf16.msra.mxu0 %v384
    %956 = vmatpush.bf16.msra.mxu0 %v381
    %957 = vmatpush.bf16.msra.mxu0 %v378
    %958 = vmatpush.bf16.msra.mxu0 %v375
    %959 = vmatmul.bf16.gmra.mxu0 %v950
    %v960 = vpop.f32.mrf.mxu0
    %v961 = vadd.f32 0.0, %v960
    %v962 = vpop.f32.mrf.mxu0
    %963 = vdwg.mxu0
    %964 = vmatpush.bf16.msra.mxu0 %v397
    %965 = vmatpush.bf16.msra.mxu0 %v394
    %966 = vmatpush.bf16.msra.mxu0 %v391
    %967 = vmatpush.bf16.msra.mxu0 %v388
    %968 = vmatpush.bf16.msra.mxu0 %v385
    %969 = vmatpush.bf16.msra.mxu0 %v382
    %970 = vmatpush.bf16.msra.mxu0 %v379
    %971 = vmatpush.bf16.msra.mxu0 %v376
    %972 = vmatmul.bf16.gmra.mxu0 %v950
    %v973 = vpop.f32.mrf.mxu0
    %v974 = vadd.f32 0.0, %v973
    %v975 = vpop.f32.mrf.mxu0
    %976 = vdwg.mxu0
    %977 = vmatpush.bf16.msra.mxu0 %v398
    %978 = vmatpush.bf16.msra.mxu0 %v395
    %979 = vmatpush.bf16.msra.mxu0 %v392
    %980 = vmatpush.bf16.msra.mxu0 %v389
    %981 = vmatpush.bf16.msra.mxu0 %v386
    %982 = vmatpush.bf16.msra.mxu0 %v383
    %983 = vmatpush.bf16.msra.mxu0 %v380
    %984 = vmatpush.bf16.msra.mxu0 %v377
    %985 = vmatmul.bf16.gmra.mxu0 %v950
    %v986 = vpop.f32.mrf.mxu0
    %v987 = vadd.f32 0.0, %v986
    %v988 = vpop.f32.mrf.mxu0
    %989 = vdwg.mxu0
    %v990 = vadd.f32 %v197, %v961
    %v991 = vadd.f32 %v226, %v974
    %v992 = vxor.u32 %v990, 2147483648
    %v993 = vxor.u32 %v991, 2147483648
    %v994 = vmul.f32 %v992, 1.442695
    %v995 = vpow.pop %v994
    %v996 = vmul.f32 %v993, 1.442695
    %v997 = vpow.pop %v996
    %v998 = vadd.f32 %v995, 1.0
    %v999 = vadd.f32 %v997, 1.0
    %v1000 = vrcp.pop %v998
    %v1001 = vmul.f32 %v998, %v1000
    %v1002 = vsub.f32 1.0, %v1001
    %v1003 = vmul.f32 %v1000, %v1002
    %v1004 = vadd.f32 %v1000, %v1003
    %vm1005 = vweird.f32 %v998
    %vm1006 = vweird.f32 %v1000
    %vm1007 = vmor %vm1005, %vm1006
    %v1008 = vsel %vm1007, %v1000, %v1004
    %v1009 = vand.u32 2147483647, %v998
    %vm1010 = vcmp.eq.f32.partialorder %v1009, 8.507059e+37
    %v1011 = vand.u32 %v998, 2147483648
    %v1012 = vor.u32 1.1754944e-38, %v1011
    %v1013 = vsel %vm1010, %v1012, %v1008
    %v1014 = vmul.f32 1.0, %v1013
    %v1015 = vrcp.pop %v999
    %v1016 = vmul.f32 %v999, %v1015
    %v1017 = vsub.f32 1.0, %v1016
    %v1018 = vmul.f32 %v1015, %v1017
    %v1019 = vadd.f32 %v1015, %v1018
    %vm1020 = vweird.f32 %v999
    %vm1021 = vweird.f32 %v1015
    %vm1022 = vmor %vm1020, %vm1021
    %v1023 = vsel %vm1022, %v1015, %v1019
    %v1024 = vand.u32 2147483647, %v999
    %vm1025 = vcmp.eq.f32.partialorder %v1024, 8.507059e+37
    %v1026 = vand.u32 %v999, 2147483648
    %v1027 = vor.u32 1.1754944e-38, %v1026
    %v1028 = vsel %vm1025, %v1027, %v1023
    %v1029 = vmul.f32 1.0, %v1028
    %v1030 = vadd.f32 %v987, %v293
    %v1031 = vmul.f32 %v1014, %v1030
    %v1032 = vadd.f32 %v255, %v1031
    %v1033 = vtanh.pop %v1032
    %v1034 = vsub.f32 1.0, %v1029
    %v1035 = vmul.f32 %v1034, %v1033
    %v1036 = vmul.f32 %v1029, %v949
    %v1037 = vadd.f32 %v1035, %v1036
    %v1038 = vpack.c.bf16 %v1037, %v1037
    %1039 = vmatpush.bf16.msra.mxu0 %v396
    %1040 = vmatpush.bf16.msra.mxu0 %v393
    %1041 = vmatpush.bf16.msra.mxu0 %v390
    %1042 = vmatpush.bf16.msra.mxu0 %v387
    %1043 = vmatpush.bf16.msra.mxu0 %v384
    %1044 = vmatpush.bf16.msra.mxu0 %v381
    %1045 = vmatpush.bf16.msra.mxu0 %v378
    %1046 = vmatpush.bf16.msra.mxu0 %v375
    %1047 = vmatmul.bf16.gmra.mxu0 %v1038
    %v1048 = vpop.f32.mrf.mxu0
    %v1049 = vadd.f32 0.0, %v1048
    %v1050 = vpop.f32.mrf.mxu0
    %1051 = vdwg.mxu0
    %1052 = vmatpush.bf16.msra.mxu0 %v397
    %1053 = vmatpush.bf16.msra.mxu0 %v394
    %1054 = vmatpush.bf16.msra.mxu0 %v391
    %1055 = vmatpush.bf16.msra.mxu0 %v388
    %1056 = vmatpush.bf16.msra.mxu0 %v385
    %1057 = vmatpush.bf16.msra.mxu0 %v382
    %1058 = vmatpush.bf16.msra.mxu0 %v379
    %1059 = vmatpush.bf16.msra.mxu0 %v376
    %1060 = vmatmul.bf16.gmra.mxu0 %v1038
    %v1061 = vpop.f32.mrf.mxu0
    %v1062 = vadd.f32 0.0, %v1061
    %v1063 = vpop.f32.mrf.mxu0
    %1064 = vdwg.mxu0
    %1065 = vmatpush.bf16.msra.mxu0 %v398
    %1066 = vmatpush.bf16.msra.mxu0 %v395
    %1067 = vmatpush.bf16.msra.mxu0 %v392
    %1068 = vmatpush.bf16.msra.mxu0 %v389
    %1069 = vmatpush.bf16.msra.mxu0 %v386
    %1070 = vmatpush.bf16.msra.mxu0 %v383
    %1071 = vmatpush.bf16.msra.mxu0 %v380
    %1072 = vmatpush.bf16.msra.mxu0 %v377
    %1073 = vmatmul.bf16.gmra.mxu0 %v1038
    %v1074 = vpop.f32.mrf.mxu0
    %v1075 = vadd.f32 0.0, %v1074
    %v1076 = vpop.f32.mrf.mxu0
    %1077 = vdwg.mxu0
    %v1078 = vadd.f32 %v199, %v1049
    %v1079 = vadd.f32 %v228, %v1062
    %v1080 = vxor.u32 %v1078, 2147483648
    %v1081 = vxor.u32 %v1079, 2147483648
    %v1082 = vmul.f32 %v1080, 1.442695
    %v1083 = vpow.pop %v1082
    %v1084 = vmul.f32 %v1081, 1.442695
    %v1085 = vpow.pop %v1084
    %v1086 = vadd.f32 %v1083, 1.0
    %v1087 = vadd.f32 %v1085, 1.0
    %v1088 = vrcp.pop %v1086
    %v1089 = vmul.f32 %v1086, %v1088
    %v1090 = vsub.f32 1.0, %v1089
    %v1091 = vmul.f32 %v1088, %v1090
    %v1092 = vadd.f32 %v1088, %v1091
    %vm1093 = vweird.f32 %v1086
    %vm1094 = vweird.f32 %v1088
    %vm1095 = vmor %vm1093, %vm1094
    %v1096 = vsel %vm1095, %v1088, %v1092
    %v1097 = vand.u32 2147483647, %v1086
    %vm1098 = vcmp.eq.f32.partialorder %v1097, 8.507059e+37
    %v1099 = vand.u32 %v1086, 2147483648
    %v1100 = vor.u32 1.1754944e-38, %v1099
    %v1101 = vsel %vm1098, %v1100, %v1096
    %v1102 = vmul.f32 1.0, %v1101
    %v1103 = vrcp.pop %v1087
    %v1104 = vmul.f32 %v1087, %v1103
    %v1105 = vsub.f32 1.0, %v1104
    %v1106 = vmul.f32 %v1103, %v1105
    %v1107 = vadd.f32 %v1103, %v1106
    %vm1108 = vweird.f32 %v1087
    %vm1109 = vweird.f32 %v1103
    %vm1110 = vmor %vm1108, %vm1109
    %v1111 = vsel %vm1110, %v1103, %v1107
    %v1112 = vand.u32 2147483647, %v1087
    %vm1113 = vcmp.eq.f32.partialorder %v1112, 8.507059e+37
    %v1114 = vand.u32 %v1087, 2147483648
    %v1115 = vor.u32 1.1754944e-38, %v1114
    %v1116 = vsel %vm1113, %v1115, %v1111
    %v1117 = vmul.f32 1.0, %v1116
    %v1118 = vadd.f32 %v1075, %v293
    %v1119 = vmul.f32 %v1102, %v1118
    %v1120 = vadd.f32 %v257, %v1119
    %v1121 = vtanh.pop %v1120
    %v1122 = vsub.f32 1.0, %v1117
    %v1123 = vmul.f32 %v1122, %v1121
    %v1124 = vmul.f32 %v1117, %v1037
    %v1125 = vadd.f32 %v1123, %v1124
    %1126 = vst [vmem:[#allocation10] sm:$0xff] %v1125
    // Predicated region
    $region38: #{tpu_custom_call.1} parent=1 // pred_check
      _
    $region39: #{tpu_custom_call.1} parent=1 // pred_check_branch
      %1128 = sbr.rel (0) target = $region41
    $region40: #{tpu_custom_call.1} parent=1 // pred_region
      %1130 = vsyncadd [#allocation4], 0
      %s1132 = sshll.u32 [#allocation10], 4
      %s1133 = int_to_ptr.vmem [resolvable:$true] %s1132
      %s1134 = sshll.u32 %s5, 4
      %s1135 = int_to_ptr.hbm [resolvable:$true] %s1134
      %1137 = dma.vmem_to_hbm [thread:$0]  %s1133, 128, %s1135, [#allocation4]
    $region41: #{tpu_custom_call.1} parent=1 // pred_fallthru
      _
    // Predicated region
    $region42: #{tpu_custom_call.1} parent=1 // pred_check
      _
    $region43: #{tpu_custom_call.1} parent=1 // pred_check_branch
      %1139 = sbr.rel (0) target = $region45
    $region44: #{tpu_custom_call.1} parent=1 // pred_region
      %1141 = dma.done [#allocation4], 128
    $region45: #{tpu_custom_call.1} parent=1 // pred_fallthru
      _
    %1142 = vsyncpa [#allocation3], 1
    %1143 = vsyncpa [#allocation6], 1
    %1144 = vsyncpa [#allocation9], 1
    %1145 = vsyncpa [#allocation4], 1

</llo_original>
